<compile_context>
chip_gen: v5e
topology: v5e:2x2
jax: 0.10.0
libtpu: 0.0.40
codegen_flags: <defaults>
</compile_context>

<pallas_src>
import functools
import math

import jax
import jax.numpy as jnp
from jax.experimental import pallas as pl
from jax.experimental.pallas import tpu as pltpu

# ---------------- configuration (small synthetic shapes) ----------------
LATENT = 128          # latent / style dim (512 in real SG2)
MAP_LAYERS = 4        # mapping-network layers (8 in real SG2)
BATCH = 2
CONST_RES = 8         # synthesis resolution (constant-input block only)
CH = 32               # synthesis channels
EMBED = 64            # synthetic "CLIP" embedding dim
LR_MUL = 0.01         # StyleGAN2 EqualLinear lr multiplier for the mapping net
N_GEN = 2             # frozen + trainable
N_CLIP_MODELS = 2
CLIP_MODEL_WEIGHTS = (1.0, 0.5)
HW = CONST_RES * CONST_RES


# =========================================================================
# The single fused forward kernel.
# Layout conventions (all 2-D, lane = last dim):
#   w / styles            : [8, 128]              (padded batch rows)
#   conv1 weights (T)     : [n_gen*batch*CH, 9*CH] rows = (g, b, cout)
#   conv1 activations (T) : [n_gen*batch*CH, HW]
#   image (channel-major) : [3*n_gen*batch, HW]    rows = c*(n_gen*batch) + g*batch + b
#   CLIP embeddings       : [n_gen*batch, n_clip*EMBED]
# =========================================================================
def _zssgan_fused_kernel(
    z_ref, map_w_ref, map_b_ref, mean_ref,
    aff1_w_ref, aff1_b_ref, conv1_w_ref, conv1_b_ref, patches_ref,
    rgb_aff_w_ref, rgb_aff_b_ref, rgb_w_ref, rgb_b_ref, proj_ref, tdir_ref,
    img_ref, loss_ref,
    *, batch, n_gen, ch, map_layers, embed, truncation, clip_weights):
  sqrt2 = math.sqrt(2.0)
  nbg = n_gen * batch

  # ---- mapping network: PixelNorm + L x (EqualLinear + fused leaky relu) ----
  # (weights/biases already pre-scaled by (1/sqrt(D))*lr_mul and lr_mul outside)
  act = z_ref[...]
  act = act * jax.lax.rsqrt(jnp.mean(act * act, axis=-1, keepdims=True) + 1e-8)
  for l in range(map_layers):
    h = jnp.dot(act, map_w_ref[l], preferred_element_type=jnp.float32) + map_b_ref[l]
    act = jnp.where(h >= 0.0, h, 0.2 * h) * sqrt2
  w = act

  # truncation trick (truncation_latent = generator_frozen.mean_latent)
  if truncation != 1.0:
    mean = mean_ref[...]
    w = mean + truncation * (w - mean)

  # ---- style affines (EqualLinear, bias init 1), frozen|trainable on columns ----
  s1 = jnp.dot(w, aff1_w_ref[...], preferred_element_type=jnp.float32) + aff1_b_ref[...]
  srgb = jnp.dot(w, rgb_aff_w_ref[...], preferred_element_type=jnp.float32) + rgb_aff_b_ref[...]

  # ---- modulate + demodulate conv1 weights for all (generator, sample) pairs ----
  conv1_w = conv1_w_ref[...]        # [n_gen*ch, 9*ch]  (pre-scaled by 1/sqrt(9*ch))
  conv1_b = conv1_b_ref[...]        # [n_gen*ch, 1]
  w_blocks, b_blocks = [], []
  for g in range(n_gen):
    base = conv1_w[g * ch:(g + 1) * ch, :]
    bcol = conv1_b[g * ch:(g + 1) * ch, :]
    for b in range(batch):
      s = s1[b:b + 1, g * ch:(g + 1) * ch]              # [1, ch]
      s_rep = jnp.concatenate([s] * 9, axis=1)          # [1, 9*ch]  (tap-major K axis)
      wm = base * s_rep                                 # [ch, 9*ch]
      demod = jax.lax.rsqrt(jnp.sum(wm * wm, axis=-1, keepdims=True) + 1e-8)
      w_blocks.append(wm * demod)
      b_blocks.append(bcol)
  wmod = jnp.concatenate(w_blocks, axis=0)              # [nbg*ch, 9*ch]
  bias = jnp.concatenate(b_blocks, axis=0)              # [nbg*ch, 1]

  # ---- conv1 as one MXU matmul against the shared-const im2col patches ----
  xT = jnp.dot(wmod, patches_ref[...], preferred_element_type=jnp.float32) + bias
  xT = jnp.where(xT >= 0.0, xT, 0.2 * xT) * sqrt2       # fused_leaky_relu
  # TODO(synk): StyleGAN2 noise injection omitted (noise weights init to zero).

  # ---- ToRGB (modulated 1x1 conv, no demodulation, bias, no activation) ----
  rgb_w = rgb_w_ref[...]            # [n_gen*3, ch]  (pre-scaled by 1/sqrt(ch))
  rgb_b = rgb_b_ref[...]            # [n_gen*3, 1]
  per_bg = []
  for g in range(n_gen):
    base = rgb_w[g * 3:(g + 1) * 3, :]
    bcol = rgb_b[g * 3:(g + 1) * 3, :]
    for b in range(batch):
      bg = g * batch + b
      wr = base * srgb[b:b + 1, g * ch:(g + 1) * ch]    # [3, ch]
      xb = xT[bg * ch:(bg + 1) * ch, :]                 # [ch, HW]
      per_bg.append(jnp.dot(wr, xb, preferred_element_type=jnp.float32) + bcol)

  # channel-major image slab: rows = c*nbg + bg (bg = g*batch + b), cols = h*W + w
  img = jnp.concatenate(
      [per_bg[bg][c:c + 1, :] for c in range(3) for bg in range(nbg)], axis=0)
  img_ref[...] = img

  # ---- fused "CLIP" directional loss (both CLIP models in one embedding) ----
  proj = proj_ref[...]              # [3, HW, n_clip*embed]  (per-channel projections)
  emb = jnp.dot(img[0:nbg, :], proj[0], preferred_element_type=jnp.float32)
  emb = emb + jnp.dot(img[nbg:2 * nbg, :], proj[1], preferred_element_type=jnp.float32)
  emb = emb + jnp.dot(img[2 * nbg:3 * nbg, :], proj[2], preferred_element_type=jnp.float32)
  tdir = tdir_ref[...]              # [1, n_clip*embed]
  total = jnp.zeros((1, 1), jnp.float32)
  for m, wgt in enumerate(clip_weights):
    e = emb[:, m * embed:(m + 1) * embed]               # [nbg, embed]
    e = e * jax.lax.rsqrt(jnp.sum(e * e, axis=-1, keepdims=True) + 1e-12)
    d = e[batch:2 * batch, :] - e[0:batch, :]           # trainable - frozen
    d = d * jax.lax.rsqrt(jnp.sum(d * d, axis=-1, keepdims=True) + 1e-12)
    cos = jnp.sum(d * tdir[:, m * embed:(m + 1) * embed], axis=-1, keepdims=True)
    total = total + wgt * jnp.mean(1.0 - cos, axis=0, keepdims=True)
  loss_ref[...] = jnp.broadcast_to(total, loss_ref.shape)   # lane-dense scalar row


# =========================================================================
# Host-side parameter packing (done ONCE at init: pre-fold EqualLinear scales,
# transpose/concat frozen|trainable weights, im2col the shared const input).
# =========================================================================
def _conv3x3_wT(base_w):
  # [Cout, Cin, 3, 3] -> [Cout, 9*Cin] with col = (kh*3+kw)*Cin + cin, pre-scaled.
  cout, cin, kh, kw = base_w.shape
  scale = 1.0 / math.sqrt(cin * kh * kw)
  return (scale * jnp.transpose(base_w, (0, 2, 3, 1))).reshape(cout, kh * kw * cin)


def _rgb_wT(base_w):
  # [3, Cin, 1, 1] -> [3, Cin], pre-scaled (ToRGB: no demodulation).
  cin = base_w.shape[1]
  return base_w[:, :, 0, 0] * (1.0 / math.sqrt(cin))


def _im2col_const_T(const_nchw):
  # [1, C, R, R] -> patches_T [9*C, R*R], row = (kh*3+kw)*C + cin, col = h*R + w.
  _, c, r, _ = const_nchw.shape
  x = jnp.transpose(const_nchw[0], (1, 2, 0))            # [R, R, C]
  xp = jnp.pad(x, ((1, 1), (1, 1), (0, 0)))
  taps = []
  for kh in range(3):
    for kw in range(3):
      t = xp[kh:kh + r, kw:kw + r, :]                    # [R, R, C]
      taps.append(jnp.transpose(t, (2, 0, 1)).reshape(c, r * r))
  return jnp.concatenate(taps, axis=0)                   # [9*C, R*R]


def pack_zssgan_params(frozen, train, mean_latent, clip_models):
  d = frozen["map_w"].shape[-1]
  aff_scale = 1.0 / math.sqrt(d)
  hw = frozen["const"].shape[-1] * frozen["const"].shape[-2]
  return {
      "map_w": frozen["map_w"] * ((1.0 / math.sqrt(d)) * LR_MUL),
      "map_b": frozen["map_b"] * LR_MUL,
      "mean_latent": mean_latent,
      "aff1_w": jnp.concatenate([frozen["affine1_w"], train["affine1_w"]], axis=1) * aff_scale,
      "aff1_b": jnp.concatenate([frozen["affine1_b"], train["affine1_b"]])[None, :],
      "conv1_w": jnp.concatenate([_conv3x3_wT(frozen["conv1_w"]),
                                  _conv3x3_wT(train["conv1_w"])], axis=0),
      "conv1_b": jnp.concatenate([frozen["conv1_b"], train["conv1_b"]])[:, None],
      # both generators share the const input (same checkpoint) -> one patch slab
      "patches": _im2col_const_T(frozen["const"]),
      "rgb_aff_w": jnp.concatenate([frozen["rgb_affine_w"], train["rgb_affine_w"]], axis=1) * aff_scale,
      "rgb_aff_b": jnp.concatenate([frozen["rgb_affine_b"], train["rgb_affine_b"]])[None, :],
      "rgb_w": jnp.concatenate([_rgb_wT(frozen["rgb_w"]), _rgb_wT(train["rgb_w"])], axis=0),
      "rgb_b": jnp.concatenate([frozen["rgb_b"], train["rgb_b"]])[:, None],
      "proj": jnp.concatenate([m["proj"] for m in clip_models], axis=1).reshape(3, hw, -1),
      "text_dir": jnp.concatenate([m["text_dir"] for m in clip_models], axis=1),
  }


# =========================================================================
# ZSSGAN.forward
# =========================================================================
def zssgan_forward(packed, z, *, truncation=1.0, clip_weights=CLIP_MODEL_WEIGHTS):
  b, d = z.shape
  conv1_w = packed["conv1_w"]
  ch = conv1_w.shape[1] // 9
  n_gen = conv1_w.shape[0] // ch
  hw = packed["patches"].shape[1]
  r = int(round(math.sqrt(hw)))
  embed = packed["text_dir"].shape[1] // len(clip_weights)
  map_layers = packed["map_w"].shape[0]

  # pad batch to a full 8-sublane tile for the mapping / affine matmuls
  bp = max(8, -(-b // 8) * 8)
  z_pad = jnp.zeros((bp, d), jnp.float32).at[:b, :].set(z)

  kernel = functools.partial(
      _zssgan_fused_kernel, batch=b, n_gen=n_gen, ch=ch, map_layers=map_layers,
      embed=embed, truncation=float(truncation), clip_weights=tuple(clip_weights))

  operands = (z_pad, packed["map_w"], packed["map_b"], packed["mean_latent"],
              packed["aff1_w"], packed["aff1_b"], packed["conv1_w"], packed["conv1_b"],
              packed["patches"], packed["rgb_aff_w"], packed["rgb_aff_b"],
              packed["rgb_w"], packed["rgb_b"], packed["proj"], packed["text_dir"])
  vmem = pl.BlockSpec(memory_space=pltpu.MemorySpace.VMEM)

  img_cm, loss_vec = pl.pallas_call(
      kernel,
      out_shape=(jax.ShapeDtypeStruct((3 * n_gen * b, hw), jnp.float32),
                 jax.ShapeDtypeStruct((1, 128), jnp.float32)),
      in_specs=[vmem] * len(operands),
      out_specs=(vmem, vmem),
  )(*operands)

  # layout plumbing back to PyTorch NCHW (outside the kernel)
  imgs = img_cm.reshape(3, n_gen, b, r, r)
  frozen_img = jax.lax.stop_gradient(jnp.transpose(imgs[:, 0], (1, 0, 2, 3)))
  trainable_img = jnp.transpose(imgs[:, 1], (1, 0, 2, 3))
  clip_loss = loss_vec[0, 0]
  return [frozen_img, trainable_img], clip_loss


# =========================================================================
# Init helpers (checkpoint stand-ins; init-time only, not the forward hot path)
# =========================================================================
def init_generator_params(key):
  ks = jax.random.split(key, 8)
  return {
      "map_w": jax.random.normal(ks[0], (MAP_LAYERS, LATENT, LATENT), jnp.float32),
      "map_b": jnp.zeros((MAP_LAYERS, 1, LATENT), jnp.float32),
      "const": jax.random.normal(ks[1], (1, CH, CONST_RES, CONST_RES), jnp.float32),
      "conv1_w": jax.random.normal(ks[2], (CH, CH, 3, 3), jnp.float32),
      "conv1_b": jnp.zeros((CH,), jnp.float32),
      "affine1_w": jax.random.normal(ks[3], (LATENT, CH), jnp.float32),
      "affine1_b": jnp.ones((CH,), jnp.float32),
      "rgb_w": jax.random.normal(ks[4], (3, CH, 1, 1), jnp.float32),
      "rgb_b": jnp.zeros((3,), jnp.float32),
      "rgb_affine_w": jax.random.normal(ks[5], (LATENT, CH), jnp.float32),
      "rgb_affine_b": jnp.ones((CH,), jnp.float32),
  }


def init_clip_models(key, n_models):
  feat = 3 * CONST_RES * CONST_RES
  models = []
  ks = jax.random.split(key, 3 * n_models)
  for m in range(n_models):
    proj = jax.random.normal(ks[3 * m], (feat, EMBED), jnp.float32) / math.sqrt(feat)
    t_src = jax.random.normal(ks[3 * m + 1], (1, EMBED), jnp.float32)
    t_tgt = jax.random.normal(ks[3 * m + 2], (1, EMBED), jnp.float32)
    tdir = t_tgt - t_src
    tdir = tdir / jnp.sqrt(jnp.sum(tdir * tdir, axis=-1, keepdims=True) + 1e-12)
    models.append({"proj": proj, "text_dir": tdir})
  return models


def _mapping_ref(z, map_w, map_b):
  # init-time only (SG2Generator.mean_latent); the forward mapping runs in the kernel
  d = z.shape[-1]
  act = z * jax.lax.rsqrt(jnp.mean(z * z, axis=-1, keepdims=True) + 1e-8)
  for l in range(map_w.shape[0]):
    h = act @ (map_w[l] * ((1.0 / math.sqrt(d)) * LR_MUL)) + map_b[l] * LR_MUL
    act = jnp.where(h >= 0.0, h, 0.2 * h) * math.sqrt(2.0)
  return act


if __name__ == "__main__":
  key = jax.random.PRNGKey(0)
  k_gen, k_pert, k_clip, k_ml, k_z = jax.random.split(key, 5)

  # "checkpoint" weights (frozen & trainable start identical; trainable slightly
  # perturbed to emulate fine-tuning divergence).
  frozen_params = init_generator_params(k_gen)
  train_params = dict(frozen_params)
  pk1, pk2 = jax.random.split(k_pert)
  train_params["conv1_w"] = frozen_params["conv1_w"] + 0.05 * jax.random.normal(
      pk1, frozen_params["conv1_w"].shape, jnp.float32)
  train_params["rgb_w"] = frozen_params["rgb_w"] + 0.05 * jax.random.normal(
      pk2, frozen_params["rgb_w"].shape, jnp.float32)

  # mean_latent (SG2Generator.__init__: generator.mean_latent(4096); small n here)
  z_ml = jax.random.normal(k_ml, (16, LATENT), jnp.float32)
  mean_latent = jnp.mean(
      _mapping_ref(z_ml, frozen_params["map_w"], frozen_params["map_b"]),
      axis=0, keepdims=True)

  clip_models = init_clip_models(k_clip, N_CLIP_MODELS)
  packed = pack_zssgan_params(frozen_params, train_params, mean_latent, clip_models)

  # forward (single fused Pallas kernel inside)
  z = jax.random.normal(k_z, (BATCH, LATENT), jnp.float32)
  fwd = jax.jit(lambda p, zz: zssgan_forward(
      p, zz, truncation=1.0, clip_weights=CLIP_MODEL_WEIGHTS))
  (frozen_img, trainable_img), clip_loss = fwd(packed, z)

  jax.block_until_ready((frozen_img, trainable_img, clip_loss))
  assert frozen_img.shape == (BATCH, 3, CONST_RES, CONST_RES)
  assert trainable_img.shape == (BATCH, 3, CONST_RES, CONST_RES)
  assert clip_loss.shape == ()
  assert bool(jnp.isfinite(clip_loss))
  assert bool(jnp.all(jnp.isfinite(frozen_img))) and bool(jnp.all(jnp.isfinite(trainable_img)))
  print("KERNEL_OK")
</pallas_src>

<mosaic_0001>
module attributes {stable_mosaic.version = 11 : i64} {
  func.func @_zssgan_fused_kernel(%arg0: memref<8x128xf32, #tpu.memory_space<vmem>>, %arg1: memref<4x128x128xf32, #tpu.memory_space<vmem>>, %arg2: memref<4x1x128xf32, #tpu.memory_space<vmem>>, %arg3: memref<1x128xf32, #tpu.memory_space<vmem>>, %arg4: memref<128x64xf32, #tpu.memory_space<vmem>>, %arg5: memref<1x64xf32, #tpu.memory_space<vmem>>, %arg6: memref<64x288xf32, #tpu.memory_space<vmem>>, %arg7: memref<64x1xf32, #tpu.memory_space<vmem>>, %arg8: memref<288x64xf32, #tpu.memory_space<vmem>>, %arg9: memref<128x64xf32, #tpu.memory_space<vmem>>, %arg10: memref<1x64xf32, #tpu.memory_space<vmem>>, %arg11: memref<6x32xf32, #tpu.memory_space<vmem>>, %arg12: memref<6x1xf32, #tpu.memory_space<vmem>>, %arg13: memref<3x64x128xf32, #tpu.memory_space<vmem>>, %arg14: memref<1x128xf32, #tpu.memory_space<vmem>>, %arg15: memref<12x64xf32, #tpu.memory_space<vmem>>, %arg16: memref<1x128xf32, #tpu.memory_space<vmem>>) attributes {dimension_semantics = [], scalar_prefetch = 0 : i64, scratch_operands = 0 : i64, tpu.core_type = #tpu.core_type<tc>} {
    %c0 = arith.constant 0 : index
    %c0_0 = arith.constant 0 : index
    %0 = vector.load %arg0[%c0, %c0_0] : memref<8x128xf32, #tpu.memory_space<vmem>>, vector<8x128xf32>
    %1 = arith.mulf %0, %0 : vector<8x128xf32>
    %cst = arith.constant dense<0.000000e+00> : vector<8xf32>
    %2 = vector.multi_reduction <add>, %1, %cst [1] : vector<8x128xf32> to vector<8xf32>
    %3 = vector.shape_cast %2 : vector<8xf32> to vector<8x1xf32>
    %cst_1 = arith.constant 1.280000e+02 : f32
    %4 = vector.broadcast %cst_1 : f32 to vector<8x1xf32>
    %5 = arith.divf %3, %4 : vector<8x1xf32>
    %cst_2 = arith.constant 9.99999993E-9 : f32
    %6 = vector.broadcast %cst_2 : f32 to vector<8x1xf32>
    %7 = arith.addf %5, %6 : vector<8x1xf32>
    %8 = math.rsqrt %7 : vector<8x1xf32>
    %9 = vector.broadcast %8 : vector<8x1xf32> to vector<8x128xf32>
    %10 = arith.mulf %0, %9 : vector<8x128xf32>
    %c0_3 = arith.constant 0 : index
    %c0_4 = arith.constant 0 : index
    %c0_5 = arith.constant 0 : index
    %11 = vector.load %arg1[%c0_3, %c0_4, %c0_5] : memref<4x128x128xf32, #tpu.memory_space<vmem>>, vector<1x128x128xf32>
    %12 = vector.shape_cast %11 : vector<1x128x128xf32> to vector<128x128xf32>
    %cst_6 = arith.constant dense<0.000000e+00> : vector<8x128xf32>
    %13 = tpu.matmul %10, %12, %cst_6 {dimension_numbers = #tpu.dot_dimension_numbers<[1], [0], [0], [1], [0, 0, 1, 1], [], []>} : vector<8x128xf32>, vector<128x128xf32>, vector<8x128xf32> -> vector<8x128xf32>
    %c0_7 = arith.constant 0 : index
    %c0_8 = arith.constant 0 : index
    %c0_9 = arith.constant 0 : index
    %14 = vector.load %arg2[%c0_7, %c0_8, %c0_9] : memref<4x1x128xf32, #tpu.memory_space<vmem>>, vector<1x1x128xf32>
    %15 = vector.shape_cast %14 : vector<1x1x128xf32> to vector<1x128xf32>
    %16 = vector.broadcast %15 : vector<1x128xf32> to vector<8x128xf32>
    %17 = arith.addf %13, %16 : vector<8x128xf32>
    %cst_10 = arith.constant 0.000000e+00 : f32
    %18 = vector.broadcast %cst_10 : f32 to vector<8x128xf32>
    %19 = arith.cmpf oge, %17, %18 : vector<8x128xf32>
    %cst_11 = arith.constant 2.000000e-01 : f32
    %20 = vector.broadcast %cst_11 : f32 to vector<8x128xf32>
    %21 = arith.mulf %20, %17 : vector<8x128xf32>
    %22 = arith.select %19, %17, %21 : vector<8x128xi1>, vector<8x128xf32>
    %cst_12 = arith.constant 1.41421354 : f32
    %23 = vector.broadcast %cst_12 : f32 to vector<8x128xf32>
    %24 = arith.mulf %22, %23 : vector<8x128xf32>
    %c1 = arith.constant 1 : index
    %c0_13 = arith.constant 0 : index
    %c0_14 = arith.constant 0 : index
    %25 = vector.load %arg1[%c1, %c0_13, %c0_14] : memref<4x128x128xf32, #tpu.memory_space<vmem>>, vector<1x128x128xf32>
    %26 = vector.shape_cast %25 : vector<1x128x128xf32> to vector<128x128xf32>
    %cst_15 = arith.constant dense<0.000000e+00> : vector<8x128xf32>
    %27 = tpu.matmul %24, %26, %cst_15 {dimension_numbers = #tpu.dot_dimension_numbers<[1], [0], [0], [1], [0, 0, 1, 1], [], []>} : vector<8x128xf32>, vector<128x128xf32>, vector<8x128xf32> -> vector<8x128xf32>
    %c1_16 = arith.constant 1 : index
    %c0_17 = arith.constant 0 : index
    %c0_18 = arith.constant 0 : index
    %28 = vector.load %arg2[%c1_16, %c0_17, %c0_18] : memref<4x1x128xf32, #tpu.memory_space<vmem>>, vector<1x1x128xf32>
    %29 = vector.shape_cast %28 : vector<1x1x128xf32> to vector<1x128xf32>
    %30 = vector.broadcast %29 : vector<1x128xf32> to vector<8x128xf32>
    %31 = arith.addf %27, %30 : vector<8x128xf32>
    %cst_19 = arith.constant 0.000000e+00 : f32
    %32 = vector.broadcast %cst_19 : f32 to vector<8x128xf32>
    %33 = arith.cmpf oge, %31, %32 : vector<8x128xf32>
    %cst_20 = arith.constant 2.000000e-01 : f32
    %34 = vector.broadcast %cst_20 : f32 to vector<8x128xf32>
    %35 = arith.mulf %34, %31 : vector<8x128xf32>
    %36 = arith.select %33, %31, %35 : vector<8x128xi1>, vector<8x128xf32>
    %cst_21 = arith.constant 1.41421354 : f32
    %37 = vector.broadcast %cst_21 : f32 to vector<8x128xf32>
    %38 = arith.mulf %36, %37 : vector<8x128xf32>
    %c2 = arith.constant 2 : index
    %c0_22 = arith.constant 0 : index
    %c0_23 = arith.constant 0 : index
    %39 = vector.load %arg1[%c2, %c0_22, %c0_23] : memref<4x128x128xf32, #tpu.memory_space<vmem>>, vector<1x128x128xf32>
    %40 = vector.shape_cast %39 : vector<1x128x128xf32> to vector<128x128xf32>
    %cst_24 = arith.constant dense<0.000000e+00> : vector<8x128xf32>
    %41 = tpu.matmul %38, %40, %cst_24 {dimension_numbers = #tpu.dot_dimension_numbers<[1], [0], [0], [1], [0, 0, 1, 1], [], []>} : vector<8x128xf32>, vector<128x128xf32>, vector<8x128xf32> -> vector<8x128xf32>
    %c2_25 = arith.constant 2 : index
    %c0_26 = arith.constant 0 : index
    %c0_27 = arith.constant 0 : index
    %42 = vector.load %arg2[%c2_25, %c0_26, %c0_27] : memref<4x1x128xf32, #tpu.memory_space<vmem>>, vector<1x1x128xf32>
    %43 = vector.shape_cast %42 : vector<1x1x128xf32> to vector<1x128xf32>
    %44 = vector.broadcast %43 : vector<1x128xf32> to vector<8x128xf32>
    %45 = arith.addf %41, %44 : vector<8x128xf32>
    %cst_28 = arith.constant 0.000000e+00 : f32
    %46 = vector.broadcast %cst_28 : f32 to vector<8x128xf32>
    %47 = arith.cmpf oge, %45, %46 : vector<8x128xf32>
    %cst_29 = arith.constant 2.000000e-01 : f32
    %48 = vector.broadcast %cst_29 : f32 to vector<8x128xf32>
    %49 = arith.mulf %48, %45 : vector<8x128xf32>
    %50 = arith.select %47, %45, %49 : vector<8x128xi1>, vector<8x128xf32>
    %cst_30 = arith.constant 1.41421354 : f32
    %51 = vector.broadcast %cst_30 : f32 to vector<8x128xf32>
    %52 = arith.mulf %50, %51 : vector<8x128xf32>
    %c3 = arith.constant 3 : index
    %c0_31 = arith.constant 0 : index
    %c0_32 = arith.constant 0 : index
    %53 = vector.load %arg1[%c3, %c0_31, %c0_32] : memref<4x128x128xf32, #tpu.memory_space<vmem>>, vector<1x128x128xf32>
    %54 = vector.shape_cast %53 : vector<1x128x128xf32> to vector<128x128xf32>
    %cst_33 = arith.constant dense<0.000000e+00> : vector<8x128xf32>
    %55 = tpu.matmul %52, %54, %cst_33 {dimension_numbers = #tpu.dot_dimension_numbers<[1], [0], [0], [1], [0, 0, 1, 1], [], []>} : vector<8x128xf32>, vector<128x128xf32>, vector<8x128xf32> -> vector<8x128xf32>
    %c3_34 = arith.constant 3 : index
    %c0_35 = arith.constant 0 : index
    %c0_36 = arith.constant 0 : index
    %56 = vector.load %arg2[%c3_34, %c0_35, %c0_36] : memref<4x1x128xf32, #tpu.memory_space<vmem>>, vector<1x1x128xf32>
    %57 = vector.shape_cast %56 : vector<1x1x128xf32> to vector<1x128xf32>
    %58 = vector.broadcast %57 : vector<1x128xf32> to vector<8x128xf32>
    %59 = arith.addf %55, %58 : vector<8x128xf32>
    %cst_37 = arith.constant 0.000000e+00 : f32
    %60 = vector.broadcast %cst_37 : f32 to vector<8x128xf32>
    %61 = arith.cmpf oge, %59, %60 : vector<8x128xf32>
    %cst_38 = arith.constant 2.000000e-01 : f32
    %62 = vector.broadcast %cst_38 : f32 to vector<8x128xf32>
    %63 = arith.mulf %62, %59 : vector<8x128xf32>
    %64 = arith.select %61, %59, %63 : vector<8x128xi1>, vector<8x128xf32>
    %cst_39 = arith.constant 1.41421354 : f32
    %65 = vector.broadcast %cst_39 : f32 to vector<8x128xf32>
    %66 = arith.mulf %64, %65 : vector<8x128xf32>
    %c0_40 = arith.constant 0 : index
    %c0_41 = arith.constant 0 : index
    %67 = vector.load %arg4[%c0_40, %c0_41] : memref<128x64xf32, #tpu.memory_space<vmem>>, vector<128x64xf32>
    %cst_42 = arith.constant dense<0.000000e+00> : vector<8x64xf32>
    %68 = tpu.matmul %66, %67, %cst_42 {dimension_numbers = #tpu.dot_dimension_numbers<[1], [0], [0], [1], [0, 0, 1, 1], [], []>} : vector<8x128xf32>, vector<128x64xf32>, vector<8x64xf32> -> vector<8x64xf32>
    %c0_43 = arith.constant 0 : index
    %c0_44 = arith.constant 0 : index
    %69 = vector.load %arg5[%c0_43, %c0_44] : memref<1x64xf32, #tpu.memory_space<vmem>>, vector<1x64xf32>
    %70 = vector.broadcast %69 : vector<1x64xf32> to vector<8x64xf32>
    %71 = arith.addf %68, %70 : vector<8x64xf32>
    %c0_45 = arith.constant 0 : index
    %c0_46 = arith.constant 0 : index
    %72 = vector.load %arg9[%c0_45, %c0_46] : memref<128x64xf32, #tpu.memory_space<vmem>>, vector<128x64xf32>
    %cst_47 = arith.constant dense<0.000000e+00> : vector<8x64xf32>
    %73 = tpu.matmul %66, %72, %cst_47 {dimension_numbers = #tpu.dot_dimension_numbers<[1], [0], [0], [1], [0, 0, 1, 1], [], []>} : vector<8x128xf32>, vector<128x64xf32>, vector<8x64xf32> -> vector<8x64xf32>
    %c0_48 = arith.constant 0 : index
    %c0_49 = arith.constant 0 : index
    %74 = vector.load %arg10[%c0_48, %c0_49] : memref<1x64xf32, #tpu.memory_space<vmem>>, vector<1x64xf32>
    %75 = vector.broadcast %74 : vector<1x64xf32> to vector<8x64xf32>
    %76 = arith.addf %73, %75 : vector<8x64xf32>
    %c0_50 = arith.constant 0 : index
    %c0_51 = arith.constant 0 : index
    %77 = vector.load %arg6[%c0_50, %c0_51] : memref<64x288xf32, #tpu.memory_space<vmem>>, vector<64x288xf32>
    %c0_52 = arith.constant 0 : index
    %c0_53 = arith.constant 0 : index
    %78 = vector.load %arg7[%c0_52, %c0_53] : memref<64x1xf32, #tpu.memory_space<vmem>>, vector<64x1xf32>
    %79 = vector.extract_strided_slice %77 {offsets = [0, 0], sizes = [32, 288], strides = [1, 1]} : vector<64x288xf32> to vector<32x288xf32>
    %80 = vector.extract_strided_slice %78 {offsets = [0, 0], sizes = [32, 1], strides = [1, 1]} : vector<64x1xf32> to vector<32x1xf32>
    %81 = vector.extract_strided_slice %71 {offsets = [0, 0], sizes = [1, 32], strides = [1, 1]} : vector<8x64xf32> to vector<1x32xf32>
    %82 = tpu.concatenate %81, %81, %81, %81, %81, %81, %81, %81, %81 in 1 : vector<1x32xf32>, vector<1x32xf32>, vector<1x32xf32>, vector<1x32xf32>, vector<1x32xf32>, vector<1x32xf32>, vector<1x32xf32>, vector<1x32xf32>, vector<1x32xf32> -> vector<1x288xf32>
    %83 = vector.broadcast %82 : vector<1x288xf32> to vector<32x288xf32>
    %84 = arith.mulf %79, %83 : vector<32x288xf32>
    %85 = arith.mulf %84, %84 : vector<32x288xf32>
    %cst_54 = arith.constant dense<0.000000e+00> : vector<32xf32>
    %86 = vector.multi_reduction <add>, %85, %cst_54 [1] : vector<32x288xf32> to vector<32xf32>
    %87 = vector.shape_cast %86 : vector<32xf32> to vector<32x1xf32>
    %cst_55 = arith.constant 9.99999993E-9 : f32
    %88 = vector.broadcast %cst_55 : f32 to vector<32x1xf32>
    %89 = arith.addf %87, %88 : vector<32x1xf32>
    %90 = math.rsqrt %89 : vector<32x1xf32>
    %91 = vector.broadcast %90 : vector<32x1xf32> to vector<32x288xf32>
    %92 = arith.mulf %84, %91 : vector<32x288xf32>
    %93 = vector.extract_strided_slice %71 {offsets = [1, 0], sizes = [1, 32], strides = [1, 1]} : vector<8x64xf32> to vector<1x32xf32>
    %94 = tpu.concatenate %93, %93, %93, %93, %93, %93, %93, %93, %93 in 1 : vector<1x32xf32>, vector<1x32xf32>, vector<1x32xf32>, vector<1x32xf32>, vector<1x32xf32>, vector<1x32xf32>, vector<1x32xf32>, vector<1x32xf32>, vector<1x32xf32> -> vector<1x288xf32>
    %95 = vector.broadcast %94 : vector<1x288xf32> to vector<32x288xf32>
    %96 = arith.mulf %79, %95 : vector<32x288xf32>
    %97 = arith.mulf %96, %96 : vector<32x288xf32>
    %cst_56 = arith.constant dense<0.000000e+00> : vector<32xf32>
    %98 = vector.multi_reduction <add>, %97, %cst_56 [1] : vector<32x288xf32> to vector<32xf32>
    %99 = vector.shape_cast %98 : vector<32xf32> to vector<32x1xf32>
    %cst_57 = arith.constant 9.99999993E-9 : f32
    %100 = vector.broadcast %cst_57 : f32 to vector<32x1xf32>
    %101 = arith.addf %99, %100 : vector<32x1xf32>
    %102 = math.rsqrt %101 : vector<32x1xf32>
    %103 = vector.broadcast %102 : vector<32x1xf32> to vector<32x288xf32>
    %104 = arith.mulf %96, %103 : vector<32x288xf32>
    %105 = vector.extract_strided_slice %77 {offsets = [32, 0], sizes = [32, 288], strides = [1, 1]} : vector<64x288xf32> to vector<32x288xf32>
    %106 = vector.extract_strided_slice %78 {offsets = [32, 0], sizes = [32, 1], strides = [1, 1]} : vector<64x1xf32> to vector<32x1xf32>
    %107 = vector.extract_strided_slice %71 {offsets = [0, 32], sizes = [1, 32], strides = [1, 1]} : vector<8x64xf32> to vector<1x32xf32>
    %108 = tpu.concatenate %107, %107, %107, %107, %107, %107, %107, %107, %107 in 1 : vector<1x32xf32>, vector<1x32xf32>, vector<1x32xf32>, vector<1x32xf32>, vector<1x32xf32>, vector<1x32xf32>, vector<1x32xf32>, vector<1x32xf32>, vector<1x32xf32> -> vector<1x288xf32>
    %109 = vector.broadcast %108 : vector<1x288xf32> to vector<32x288xf32>
    %110 = arith.mulf %105, %109 : vector<32x288xf32>
    %111 = arith.mulf %110, %110 : vector<32x288xf32>
    %cst_58 = arith.constant dense<0.000000e+00> : vector<32xf32>
    %112 = vector.multi_reduction <add>, %111, %cst_58 [1] : vector<32x288xf32> to vector<32xf32>
    %113 = vector.shape_cast %112 : vector<32xf32> to vector<32x1xf32>
    %cst_59 = arith.constant 9.99999993E-9 : f32
    %114 = vector.broadcast %cst_59 : f32 to vector<32x1xf32>
    %115 = arith.addf %113, %114 : vector<32x1xf32>
    %116 = math.rsqrt %115 : vector<32x1xf32>
    %117 = vector.broadcast %116 : vector<32x1xf32> to vector<32x288xf32>
    %118 = arith.mulf %110, %117 : vector<32x288xf32>
    %119 = vector.extract_strided_slice %71 {offsets = [1, 32], sizes = [1, 32], strides = [1, 1]} : vector<8x64xf32> to vector<1x32xf32>
    %120 = tpu.concatenate %119, %119, %119, %119, %119, %119, %119, %119, %119 in 1 : vector<1x32xf32>, vector<1x32xf32>, vector<1x32xf32>, vector<1x32xf32>, vector<1x32xf32>, vector<1x32xf32>, vector<1x32xf32>, vector<1x32xf32>, vector<1x32xf32> -> vector<1x288xf32>
    %121 = vector.broadcast %120 : vector<1x288xf32> to vector<32x288xf32>
    %122 = arith.mulf %105, %121 : vector<32x288xf32>
    %123 = arith.mulf %122, %122 : vector<32x288xf32>
    %cst_60 = arith.constant dense<0.000000e+00> : vector<32xf32>
    %124 = vector.multi_reduction <add>, %123, %cst_60 [1] : vector<32x288xf32> to vector<32xf32>
    %125 = vector.shape_cast %124 : vector<32xf32> to vector<32x1xf32>
    %cst_61 = arith.constant 9.99999993E-9 : f32
    %126 = vector.broadcast %cst_61 : f32 to vector<32x1xf32>
    %127 = arith.addf %125, %126 : vector<32x1xf32>
    %128 = math.rsqrt %127 : vector<32x1xf32>
    %129 = vector.broadcast %128 : vector<32x1xf32> to vector<32x288xf32>
    %130 = arith.mulf %122, %129 : vector<32x288xf32>
    %131 = tpu.concatenate %92, %104, %118, %130 in 0 : vector<32x288xf32>, vector<32x288xf32>, vector<32x288xf32>, vector<32x288xf32> -> vector<128x288xf32>
    %132 = tpu.concatenate %80, %80, %106, %106 in 0 : vector<32x1xf32>, vector<32x1xf32>, vector<32x1xf32>, vector<32x1xf32> -> vector<128x1xf32>
    %c0_62 = arith.constant 0 : index
    %c0_63 = arith.constant 0 : index
    %133 = vector.load %arg8[%c0_62, %c0_63] : memref<288x64xf32, #tpu.memory_space<vmem>>, vector<288x64xf32>
    %cst_64 = arith.constant dense<0.000000e+00> : vector<128x64xf32>
    %134 = tpu.matmul %131, %133, %cst_64 {dimension_numbers = #tpu.dot_dimension_numbers<[1], [0], [0], [1], [0, 0, 1, 1], [], []>} : vector<128x288xf32>, vector<288x64xf32>, vector<128x64xf32> -> vector<128x64xf32>
    %135 = vector.broadcast %132 : vector<128x1xf32> to vector<128x64xf32>
    %136 = arith.addf %134, %135 : vector<128x64xf32>
    %cst_65 = arith.constant 0.000000e+00 : f32
    %137 = vector.broadcast %cst_65 : f32 to vector<128x64xf32>
    %138 = arith.cmpf oge, %136, %137 : vector<128x64xf32>
    %cst_66 = arith.constant 2.000000e-01 : f32
    %139 = vector.broadcast %cst_66 : f32 to vector<128x64xf32>
    %140 = arith.mulf %139, %136 : vector<128x64xf32>
    %141 = arith.select %138, %136, %140 : vector<128x64xi1>, vector<128x64xf32>
    %cst_67 = arith.constant 1.41421354 : f32
    %142 = vector.broadcast %cst_67 : f32 to vector<128x64xf32>
    %143 = arith.mulf %141, %142 : vector<128x64xf32>
    %c0_68 = arith.constant 0 : index
    %c0_69 = arith.constant 0 : index
    %144 = vector.load %arg11[%c0_68, %c0_69] : memref<6x32xf32, #tpu.memory_space<vmem>>, vector<6x32xf32>
    %c0_70 = arith.constant 0 : index
    %c0_71 = arith.constant 0 : index
    %145 = vector.load %arg12[%c0_70, %c0_71] : memref<6x1xf32, #tpu.memory_space<vmem>>, vector<6x1xf32>
    %146 = vector.extract_strided_slice %144 {offsets = [0, 0], sizes = [3, 32], strides = [1, 1]} : vector<6x32xf32> to vector<3x32xf32>
    %147 = vector.extract_strided_slice %145 {offsets = [0, 0], sizes = [3, 1], strides = [1, 1]} : vector<6x1xf32> to vector<3x1xf32>
    %148 = vector.extract_strided_slice %76 {offsets = [0, 0], sizes = [1, 32], strides = [1, 1]} : vector<8x64xf32> to vector<1x32xf32>
    %149 = vector.broadcast %148 : vector<1x32xf32> to vector<3x32xf32>
    %150 = arith.mulf %146, %149 : vector<3x32xf32>
    %151 = vector.extract_strided_slice %143 {offsets = [0, 0], sizes = [32, 64], strides = [1, 1]} : vector<128x64xf32> to vector<32x64xf32>
    %cst_72 = arith.constant dense<0.000000e+00> : vector<3x64xf32>
    %152 = tpu.matmul %150, %151, %cst_72 {dimension_numbers = #tpu.dot_dimension_numbers<[1], [0], [0], [1], [0, 0, 1, 1], [], []>} : vector<3x32xf32>, vector<32x64xf32>, vector<3x64xf32> -> vector<3x64xf32>
    %153 = vector.broadcast %147 : vector<3x1xf32> to vector<3x64xf32>
    %154 = arith.addf %152, %153 : vector<3x64xf32>
    %155 = vector.extract_strided_slice %76 {offsets = [1, 0], sizes = [1, 32], strides = [1, 1]} : vector<8x64xf32> to vector<1x32xf32>
    %156 = vector.broadcast %155 : vector<1x32xf32> to vector<3x32xf32>
    %157 = arith.mulf %146, %156 : vector<3x32xf32>
    %158 = vector.extract_strided_slice %143 {offsets = [32, 0], sizes = [32, 64], strides = [1, 1]} : vector<128x64xf32> to vector<32x64xf32>
    %cst_73 = arith.constant dense<0.000000e+00> : vector<3x64xf32>
    %159 = tpu.matmul %157, %158, %cst_73 {dimension_numbers = #tpu.dot_dimension_numbers<[1], [0], [0], [1], [0, 0, 1, 1], [], []>} : vector<3x32xf32>, vector<32x64xf32>, vector<3x64xf32> -> vector<3x64xf32>
    %160 = vector.broadcast %147 : vector<3x1xf32> to vector<3x64xf32>
    %161 = arith.addf %159, %160 : vector<3x64xf32>
    %162 = vector.extract_strided_slice %144 {offsets = [3, 0], sizes = [3, 32], strides = [1, 1]} : vector<6x32xf32> to vector<3x32xf32>
    %163 = vector.extract_strided_slice %145 {offsets = [3, 0], sizes = [3, 1], strides = [1, 1]} : vector<6x1xf32> to vector<3x1xf32>
    %164 = vector.extract_strided_slice %76 {offsets = [0, 32], sizes = [1, 32], strides = [1, 1]} : vector<8x64xf32> to vector<1x32xf32>
    %165 = vector.broadcast %164 : vector<1x32xf32> to vector<3x32xf32>
    %166 = arith.mulf %162, %165 : vector<3x32xf32>
    %167 = vector.extract_strided_slice %143 {offsets = [64, 0], sizes = [32, 64], strides = [1, 1]} : vector<128x64xf32> to vector<32x64xf32>
    %cst_74 = arith.constant dense<0.000000e+00> : vector<3x64xf32>
    %168 = tpu.matmul %166, %167, %cst_74 {dimension_numbers = #tpu.dot_dimension_numbers<[1], [0], [0], [1], [0, 0, 1, 1], [], []>} : vector<3x32xf32>, vector<32x64xf32>, vector<3x64xf32> -> vector<3x64xf32>
    %169 = vector.broadcast %163 : vector<3x1xf32> to vector<3x64xf32>
    %170 = arith.addf %168, %169 : vector<3x64xf32>
    %171 = vector.extract_strided_slice %76 {offsets = [1, 32], sizes = [1, 32], strides = [1, 1]} : vector<8x64xf32> to vector<1x32xf32>
    %172 = vector.broadcast %171 : vector<1x32xf32> to vector<3x32xf32>
    %173 = arith.mulf %162, %172 : vector<3x32xf32>
    %174 = vector.extract_strided_slice %143 {offsets = [96, 0], sizes = [32, 64], strides = [1, 1]} : vector<128x64xf32> to vector<32x64xf32>
    %cst_75 = arith.constant dense<0.000000e+00> : vector<3x64xf32>
    %175 = tpu.matmul %173, %174, %cst_75 {dimension_numbers = #tpu.dot_dimension_numbers<[1], [0], [0], [1], [0, 0, 1, 1], [], []>} : vector<3x32xf32>, vector<32x64xf32>, vector<3x64xf32> -> vector<3x64xf32>
    %176 = vector.broadcast %163 : vector<3x1xf32> to vector<3x64xf32>
    %177 = arith.addf %175, %176 : vector<3x64xf32>
    %178 = vector.extract_strided_slice %154 {offsets = [0, 0], sizes = [1, 64], strides = [1, 1]} : vector<3x64xf32> to vector<1x64xf32>
    %179 = vector.extract_strided_slice %161 {offsets = [0, 0], sizes = [1, 64], strides = [1, 1]} : vector<3x64xf32> to vector<1x64xf32>
    %180 = vector.extract_strided_slice %170 {offsets = [0, 0], sizes = [1, 64], strides = [1, 1]} : vector<3x64xf32> to vector<1x64xf32>
    %181 = vector.extract_strided_slice %177 {offsets = [0, 0], sizes = [1, 64], strides = [1, 1]} : vector<3x64xf32> to vector<1x64xf32>
    %182 = vector.extract_strided_slice %154 {offsets = [1, 0], sizes = [1, 64], strides = [1, 1]} : vector<3x64xf32> to vector<1x64xf32>
    %183 = vector.extract_strided_slice %161 {offsets = [1, 0], sizes = [1, 64], strides = [1, 1]} : vector<3x64xf32> to vector<1x64xf32>
    %184 = vector.extract_strided_slice %170 {offsets = [1, 0], sizes = [1, 64], strides = [1, 1]} : vector<3x64xf32> to vector<1x64xf32>
    %185 = vector.extract_strided_slice %177 {offsets = [1, 0], sizes = [1, 64], strides = [1, 1]} : vector<3x64xf32> to vector<1x64xf32>
    %186 = vector.extract_strided_slice %154 {offsets = [2, 0], sizes = [1, 64], strides = [1, 1]} : vector<3x64xf32> to vector<1x64xf32>
    %187 = vector.extract_strided_slice %161 {offsets = [2, 0], sizes = [1, 64], strides = [1, 1]} : vector<3x64xf32> to vector<1x64xf32>
    %188 = vector.extract_strided_slice %170 {offsets = [2, 0], sizes = [1, 64], strides = [1, 1]} : vector<3x64xf32> to vector<1x64xf32>
    %189 = vector.extract_strided_slice %177 {offsets = [2, 0], sizes = [1, 64], strides = [1, 1]} : vector<3x64xf32> to vector<1x64xf32>
    %190 = tpu.concatenate %178, %179, %180, %181, %182, %183, %184, %185, %186, %187, %188, %189 in 0 : vector<1x64xf32>, vector<1x64xf32>, vector<1x64xf32>, vector<1x64xf32>, vector<1x64xf32>, vector<1x64xf32>, vector<1x64xf32>, vector<1x64xf32>, vector<1x64xf32>, vector<1x64xf32>, vector<1x64xf32>, vector<1x64xf32> -> vector<12x64xf32>
    %c0_76 = arith.constant 0 : index
    %c0_77 = arith.constant 0 : index
    %191 = vector.load %arg15[%c0_76, %c0_77] : memref<12x64xf32, #tpu.memory_space<vmem>>, vector<12x64xf32>
    tpu.vector_store %arg15[%c0_76, %c0_77], %190 {strides = array<i32>} : memref<12x64xf32, #tpu.memory_space<vmem>>, vector<12x64xf32>,
    %c0_78 = arith.constant 0 : index
    %c0_79 = arith.constant 0 : index
    %c0_80 = arith.constant 0 : index
    %192 = vector.load %arg13[%c0_78, %c0_79, %c0_80] : memref<3x64x128xf32, #tpu.memory_space<vmem>>, vector<3x64x128xf32>
    %193 = vector.extract_strided_slice %190 {offsets = [0, 0], sizes = [4, 64], strides = [1, 1]} : vector<12x64xf32> to vector<4x64xf32>
    %194 = vector.extract_strided_slice %192 {offsets = [0, 0, 0], sizes = [1, 64, 128], strides = [1, 1, 1]} : vector<3x64x128xf32> to vector<1x64x128xf32>
    %195 = vector.shape_cast %194 : vector<1x64x128xf32> to vector<64x128xf32>
    %cst_81 = arith.constant dense<0.000000e+00> : vector<4x128xf32>
    %196 = tpu.matmul %193, %195, %cst_81 {dimension_numbers = #tpu.dot_dimension_numbers<[1], [0], [0], [1], [0, 0, 1, 1], [], []>} : vector<4x64xf32>, vector<64x128xf32>, vector<4x128xf32> -> vector<4x128xf32>
    %197 = vector.extract_strided_slice %190 {offsets = [4, 0], sizes = [4, 64], strides = [1, 1]} : vector<12x64xf32> to vector<4x64xf32>
    %198 = vector.extract_strided_slice %192 {offsets = [1, 0, 0], sizes = [1, 64, 128], strides = [1, 1, 1]} : vector<3x64x128xf32> to vector<1x64x128xf32>
    %199 = vector.shape_cast %198 : vector<1x64x128xf32> to vector<64x128xf32>
    %cst_82 = arith.constant dense<0.000000e+00> : vector<4x128xf32>
    %200 = tpu.matmul %197, %199, %cst_82 {dimension_numbers = #tpu.dot_dimension_numbers<[1], [0], [0], [1], [0, 0, 1, 1], [], []>} : vector<4x64xf32>, vector<64x128xf32>, vector<4x128xf32> -> vector<4x128xf32>
    %201 = arith.addf %196, %200 : vector<4x128xf32>
    %202 = vector.extract_strided_slice %190 {offsets = [8, 0], sizes = [4, 64], strides = [1, 1]} : vector<12x64xf32> to vector<4x64xf32>
    %203 = vector.extract_strided_slice %192 {offsets = [2, 0, 0], sizes = [1, 64, 128], strides = [1, 1, 1]} : vector<3x64x128xf32> to vector<1x64x128xf32>
    %204 = vector.shape_cast %203 : vector<1x64x128xf32> to vector<64x128xf32>
    %cst_83 = arith.constant dense<0.000000e+00> : vector<4x128xf32>
    %205 = tpu.matmul %202, %204, %cst_83 {dimension_numbers = #tpu.dot_dimension_numbers<[1], [0], [0], [1], [0, 0, 1, 1], [], []>} : vector<4x64xf32>, vector<64x128xf32>, vector<4x128xf32> -> vector<4x128xf32>
    %206 = arith.addf %201, %205 : vector<4x128xf32>
    %c0_84 = arith.constant 0 : index
    %c0_85 = arith.constant 0 : index
    %207 = vector.load %arg14[%c0_84, %c0_85] : memref<1x128xf32, #tpu.memory_space<vmem>>, vector<1x128xf32>
    %cst_86 = arith.constant 0.000000e+00 : f32
    %208 = vector.broadcast %cst_86 : f32 to vector<1x1xf32>
    %209 = vector.extract_strided_slice %206 {offsets = [0, 0], sizes = [4, 64], strides = [1, 1]} : vector<4x128xf32> to vector<4x64xf32>
    %210 = arith.mulf %209, %209 : vector<4x64xf32>
    %cst_87 = arith.constant dense<0.000000e+00> : vector<4xf32>
    %211 = vector.multi_reduction <add>, %210, %cst_87 [1] : vector<4x64xf32> to vector<4xf32>
    %212 = vector.shape_cast %211 : vector<4xf32> to vector<4x1xf32>
    %cst_88 = arith.constant 9.99999996E-13 : f32
    %213 = vector.broadcast %cst_88 : f32 to vector<4x1xf32>
    %214 = arith.addf %212, %213 : vector<4x1xf32>
    %215 = math.rsqrt %214 : vector<4x1xf32>
    %216 = vector.broadcast %215 : vector<4x1xf32> to vector<4x64xf32>
    %217 = arith.mulf %209, %216 : vector<4x64xf32>
    %218 = vector.extract_strided_slice %217 {offsets = [2, 0], sizes = [2, 64], strides = [1, 1]} : vector<4x64xf32> to vector<2x64xf32>
    %219 = vector.extract_strided_slice %217 {offsets = [0, 0], sizes = [2, 64], strides = [1, 1]} : vector<4x64xf32> to vector<2x64xf32>
    %220 = arith.subf %218, %219 : vector<2x64xf32>
    %221 = arith.mulf %220, %220 : vector<2x64xf32>
    %cst_89 = arith.constant dense<0.000000e+00> : vector<2xf32>
    %222 = vector.multi_reduction <add>, %221, %cst_89 [1] : vector<2x64xf32> to vector<2xf32>
    %223 = vector.shape_cast %222 : vector<2xf32> to vector<2x1xf32>
    %cst_90 = arith.constant 9.99999996E-13 : f32
    %224 = vector.broadcast %cst_90 : f32 to vector<2x1xf32>
    %225 = arith.addf %223, %224 : vector<2x1xf32>
    %226 = math.rsqrt %225 : vector<2x1xf32>
    %227 = vector.broadcast %226 : vector<2x1xf32> to vector<2x64xf32>
    %228 = arith.mulf %220, %227 : vector<2x64xf32>
    %229 = vector.extract_strided_slice %207 {offsets = [0, 0], sizes = [1, 64], strides = [1, 1]} : vector<1x128xf32> to vector<1x64xf32>
    %230 = vector.broadcast %229 : vector<1x64xf32> to vector<2x64xf32>
    %231 = arith.mulf %228, %230 : vector<2x64xf32>
    %cst_91 = arith.constant dense<0.000000e+00> : vector<2xf32>
    %232 = vector.multi_reduction <add>, %231, %cst_91 [1] : vector<2x64xf32> to vector<2xf32>
    %233 = vector.shape_cast %232 : vector<2xf32> to vector<2x1xf32>
    %cst_92 = arith.constant 1.000000e+00 : f32
    %234 = vector.broadcast %cst_92 : f32 to vector<2x1xf32>
    %235 = arith.subf %234, %233 : vector<2x1xf32>
    %cst_93 = arith.constant dense<0.000000e+00> : vector<1xf32>
    %236 = vector.multi_reduction <add>, %235, %cst_93 [0] : vector<2x1xf32> to vector<1xf32>
    %237 = vector.shape_cast %236 : vector<1xf32> to vector<1x1xf32>
    %cst_94 = arith.constant 2.000000e+00 : f32
    %238 = vector.broadcast %cst_94 : f32 to vector<1x1xf32>
    %239 = arith.divf %237, %238 : vector<1x1xf32>
    %cst_95 = arith.constant 1.000000e+00 : f32
    %240 = vector.broadcast %cst_95 : f32 to vector<1x1xf32>
    %241 = arith.mulf %240, %239 : vector<1x1xf32>
    %242 = arith.addf %208, %241 : vector<1x1xf32>
    %243 = vector.extract_strided_slice %206 {offsets = [0, 64], sizes = [4, 64], strides = [1, 1]} : vector<4x128xf32> to vector<4x64xf32>
    %244 = arith.mulf %243, %243 : vector<4x64xf32>
    %cst_96 = arith.constant dense<0.000000e+00> : vector<4xf32>
    %245 = vector.multi_reduction <add>, %244, %cst_96 [1] : vector<4x64xf32> to vector<4xf32>
    %246 = vector.shape_cast %245 : vector<4xf32> to vector<4x1xf32>
    %cst_97 = arith.constant 9.99999996E-13 : f32
    %247 = vector.broadcast %cst_97 : f32 to vector<4x1xf32>
    %248 = arith.addf %246, %247 : vector<4x1xf32>
    %249 = math.rsqrt %248 : vector<4x1xf32>
    %250 = vector.broadcast %249 : vector<4x1xf32> to vector<4x64xf32>
    %251 = arith.mulf %243, %250 : vector<4x64xf32>
    %252 = vector.extract_strided_slice %251 {offsets = [2, 0], sizes = [2, 64], strides = [1, 1]} : vector<4x64xf32> to vector<2x64xf32>
    %253 = vector.extract_strided_slice %251 {offsets = [0, 0], sizes = [2, 64], strides = [1, 1]} : vector<4x64xf32> to vector<2x64xf32>
    %254 = arith.subf %252, %253 : vector<2x64xf32>
    %255 = arith.mulf %254, %254 : vector<2x64xf32>
    %cst_98 = arith.constant dense<0.000000e+00> : vector<2xf32>
    %256 = vector.multi_reduction <add>, %255, %cst_98 [1] : vector<2x64xf32> to vector<2xf32>
    %257 = vector.shape_cast %256 : vector<2xf32> to vector<2x1xf32>
    %cst_99 = arith.constant 9.99999996E-13 : f32
    %258 = vector.broadcast %cst_99 : f32 to vector<2x1xf32>
    %259 = arith.addf %257, %258 : vector<2x1xf32>
    %260 = math.rsqrt %259 : vector<2x1xf32>
    %261 = vector.broadcast %260 : vector<2x1xf32> to vector<2x64xf32>
    %262 = arith.mulf %254, %261 : vector<2x64xf32>
    %263 = vector.extract_strided_slice %207 {offsets = [0, 64], sizes = [1, 64], strides = [1, 1]} : vector<1x128xf32> to vector<1x64xf32>
    %264 = vector.broadcast %263 : vector<1x64xf32> to vector<2x64xf32>
    %265 = arith.mulf %262, %264 : vector<2x64xf32>
    %cst_100 = arith.constant dense<0.000000e+00> : vector<2xf32>
    %266 = vector.multi_reduction <add>, %265, %cst_100 [1] : vector<2x64xf32> to vector<2xf32>
    %267 = vector.shape_cast %266 : vector<2xf32> to vector<2x1xf32>
    %cst_101 = arith.constant 1.000000e+00 : f32
    %268 = vector.broadcast %cst_101 : f32 to vector<2x1xf32>
    %269 = arith.subf %268, %267 : vector<2x1xf32>
    %cst_102 = arith.constant dense<0.000000e+00> : vector<1xf32>
    %270 = vector.multi_reduction <add>, %269, %cst_102 [0] : vector<2x1xf32> to vector<1xf32>
    %271 = vector.shape_cast %270 : vector<1xf32> to vector<1x1xf32>
    %cst_103 = arith.constant 2.000000e+00 : f32
    %272 = vector.broadcast %cst_103 : f32 to vector<1x1xf32>
    %273 = arith.divf %271, %272 : vector<1x1xf32>
    %cst_104 = arith.constant 5.000000e-01 : f32
    %274 = vector.broadcast %cst_104 : f32 to vector<1x1xf32>
    %275 = arith.mulf %274, %273 : vector<1x1xf32>
    %276 = arith.addf %242, %275 : vector<1x1xf32>
    %277 = vector.shape_cast %276 : vector<1x1xf32> to vector<1x1xf32>
    %278 = vector.broadcast %277 : vector<1x1xf32> to vector<1x128xf32>
    %c0_105 = arith.constant 0 : index
    %c0_106 = arith.constant 0 : index
    %279 = vector.load %arg16[%c0_105, %c0_106] : memref<1x128xf32, #tpu.memory_space<vmem>>, vector<1x128xf32>
    tpu.vector_store %arg16[%c0_105, %c0_106], %278 {strides = array<i32>} : memref<1x128xf32, #tpu.memory_space<vmem>>, vector<1x128xf32>,
    return
  }
}

</mosaic_0001>

<llo_original>
// kernel: _lambda_.1
$region0: #{_lambda_.1}
  #allocation0 [shape = 'u32[]', space=smem, size = 0x4, offset = 0x4, fixed_abs, tag = 'smem constant byte address 0x4 - core index']
  #allocation1 [shape = 'u32[72,128]{1,0:T(1,128)}', space=vmem, size = 0x9000, scoped, tag = 'internal scratch']
  %s0 = inlined_call_operand.vmem [shape: f32[8,128], index: 0, kind: input, shape index: {}]
  %s1 = inlined_call_operand.vmem [shape: f32[4,128,128], index: 1, kind: input, shape index: {}]
  %s2 = inlined_call_operand.vmem [shape: f32[4,1,128], index: 2, kind: input, shape index: {}]
  %s3 = inlined_call_operand.vmem [shape: f32[1,128], index: 3, kind: input, shape index: {}]
  %s4 = inlined_call_operand.vmem [shape: f32[128,64], index: 4, kind: input, shape index: {}]
  %s5 = inlined_call_operand.vmem [shape: f32[1,64], index: 5, kind: input, shape index: {}]
  %s6 = inlined_call_operand.hbm [shape: f32[64,288], index: 6, kind: input, shape index: {}]
  %s7 = inlined_call_operand.vmem [shape: f32[64,1], index: 7, kind: input, shape index: {}]
  %s8 = inlined_call_operand.vmem [shape: f32[288,64], index: 8, kind: input, shape index: {}]
  %s9 = inlined_call_operand.vmem [shape: f32[128,64], index: 9, kind: input, shape index: {}]
  %s10 = inlined_call_operand.vmem [shape: f32[1,64], index: 10, kind: input, shape index: {}]
  %s11 = inlined_call_operand.vmem [shape: f32[6,32], index: 11, kind: input, shape index: {}]
  %s12 = inlined_call_operand.vmem [shape: f32[6,1], index: 12, kind: input, shape index: {}]
  %s13 = inlined_call_operand.hbm [shape: f32[3,64,128], index: 13, kind: input, shape index: {}]
  %s14 = inlined_call_operand.vmem [shape: f32[1,128], index: 14, kind: input, shape index: {}]
  %s15 = inlined_call_operand.vmem [shape: f32[12,64], index: 15, kind: output, shape index: {0}]
  %s16 = inlined_call_operand.hbm [shape: f32[1,128], index: 16, kind: output, shape index: {1}]
  %17 = xla_tuple %s15, %s16
  %s18 = sld [smem:[#allocation0]]
  $region86: #{_lambda_.1} parent=0
    _
  %s20 = ssub.s32 1, %s18
  %s21 = scalar_select 0, %s20, %s18
  $region1: #{_lambda_.1} parent=0
    #allocation2 [shape = 'u8[98304]{0}', space=vmem, size = 0x18000, scoped, tag = 'input window, operand 6, single buffered']
    #allocation3 [shape = 's32[1]{0}', space=sflag, size = 0x4, scoped, tag = 'scoped memory for _lambda_.1']
    #allocation4 [shape = 's32[1]{0}', space=sflag, size = 0x4, scoped, tag = 'scoped memory for _lambda_.1']
    #allocation5 [shape = 'u8[98304]{0}', space=vmem, size = 0x18000, scoped, tag = 'input window, operand 13, single buffered']
    #allocation6 [shape = 's32[1]{0}', space=sflag, size = 0x4, scoped, tag = 'scoped memory for _lambda_.1']
    #allocation7 [shape = 'u8[512]{0}', space=vmem, size = 0x400, scoped, tag = 'output window, operand 1, single buffered']
    %22 = vsyncpa [#allocation3], 0
    %23 = vsyncpa [#allocation6], 0
    %24 = vsyncpa [#allocation4], 0
    // Predicated region
    $region2: #{_lambda_.1} parent=1 // pred_check
      _
    $region3: #{_lambda_.1} parent=1 // pred_check_branch
      %26 = sbr.rel (0) target = $region5
    $region4: #{_lambda_.1} parent=1 // pred_region
      _
    $region5: #{_lambda_.1} parent=1 // pred_fallthru
      _
    // Predicated region
    $region6: #{_lambda_.1} parent=1 // pred_check
      _
    $region7: #{_lambda_.1} parent=1 // pred_check_branch
      %28 = sbr.rel (0) target = $region9
    $region8: #{_lambda_.1} parent=1 // pred_region
      _
    $region9: #{_lambda_.1} parent=1 // pred_fallthru
      _
    // Predicated region
    $region10: #{_lambda_.1} parent=1 // pred_check
      _
    $region11: #{_lambda_.1} parent=1 // pred_check_branch
      %30 = sbr.rel (0) target = $region13
    $region12: #{_lambda_.1} parent=1 // pred_region
      _
    $region13: #{_lambda_.1} parent=1 // pred_fallthru
      _
    // Predicated region
    $region14: #{_lambda_.1} parent=1 // pred_check
      _
    $region15: #{_lambda_.1} parent=1 // pred_check_branch
      %32 = sbr.rel (0) target = $region17
    $region16: #{_lambda_.1} parent=1 // pred_region
      _
    $region17: #{_lambda_.1} parent=1 // pred_fallthru
      _
    // Predicated region
    $region18: #{_lambda_.1} parent=1 // pred_check
      _
    $region19: #{_lambda_.1} parent=1 // pred_check_branch
      %34 = sbr.rel (0) target = $region21
    $region20: #{_lambda_.1} parent=1 // pred_region
      _
    $region21: #{_lambda_.1} parent=1 // pred_fallthru
      _
    // Predicated region
    $region22: #{_lambda_.1} parent=1 // pred_check
      _
    $region23: #{_lambda_.1} parent=1 // pred_check_branch
      %36 = sbr.rel (0) target = $region25
    $region24: #{_lambda_.1} parent=1 // pred_region
      _
    $region25: #{_lambda_.1} parent=1 // pred_fallthru
      _
    // Predicated region
    $region26: #{_lambda_.1} parent=1 // pred_check
      _
    $region27: #{_lambda_.1} parent=1 // pred_check_branch
      %38 = sbr.rel (0) target = $region29
    $region28: #{_lambda_.1} parent=1 // pred_region
      %40 = vsyncadd [#allocation3], 0
      %s41 = sshll.u32 %s6, 4
      %s42 = int_to_ptr.hbm [resolvable:$true] %s41
      %s43 = sshll.u32 [#allocation2], 4
      %s44 = int_to_ptr.vmem [resolvable:$true] %s43
      %49 = dma.hbm_to_vmem [thread:$0]  %s42, 3072, %s44, [#allocation3], 384, 384, 24
    $region29: #{_lambda_.1} parent=1 // pred_fallthru
      _
    // Predicated region
    $region30: #{_lambda_.1} parent=1 // pred_check
      _
    $region31: #{_lambda_.1} parent=1 // pred_check_branch
      %51 = sbr.rel (0) target = $region33
    $region32: #{_lambda_.1} parent=1 // pred_region
      _
    $region33: #{_lambda_.1} parent=1 // pred_fallthru
      _
    // Predicated region
    $region34: #{_lambda_.1} parent=1 // pred_check
      _
    $region35: #{_lambda_.1} parent=1 // pred_check_branch
      %53 = sbr.rel (0) target = $region37
    $region36: #{_lambda_.1} parent=1 // pred_region
      _
    $region37: #{_lambda_.1} parent=1 // pred_fallthru
      _
    // Predicated region
    $region38: #{_lambda_.1} parent=1 // pred_check
      _
    $region39: #{_lambda_.1} parent=1 // pred_check_branch
      %55 = sbr.rel (0) target = $region41
    $region40: #{_lambda_.1} parent=1 // pred_region
      _
    $region41: #{_lambda_.1} parent=1 // pred_fallthru
      _
    // Predicated region
    $region42: #{_lambda_.1} parent=1 // pred_check
      _
    $region43: #{_lambda_.1} parent=1 // pred_check_branch
      %57 = sbr.rel (0) target = $region45
    $region44: #{_lambda_.1} parent=1 // pred_region
      _
    $region45: #{_lambda_.1} parent=1 // pred_fallthru
      _
    // Predicated region
    $region46: #{_lambda_.1} parent=1 // pred_check
      _
    $region47: #{_lambda_.1} parent=1 // pred_check_branch
      %59 = sbr.rel (0) target = $region49
    $region48: #{_lambda_.1} parent=1 // pred_region
      _
    $region49: #{_lambda_.1} parent=1 // pred_fallthru
      _
    // Predicated region
    $region50: #{_lambda_.1} parent=1 // pred_check
      _
    $region51: #{_lambda_.1} parent=1 // pred_check_branch
      %61 = sbr.rel (0) target = $region53
    $region52: #{_lambda_.1} parent=1 // pred_region
      _
    $region53: #{_lambda_.1} parent=1 // pred_fallthru
      _
    // Predicated region
    $region54: #{_lambda_.1} parent=1 // pred_check
      _
    $region55: #{_lambda_.1} parent=1 // pred_check_branch
      %63 = sbr.rel (0) target = $region57
    $region56: #{_lambda_.1} parent=1 // pred_region
      %65 = vsyncadd [#allocation6], 0
      %s66 = sshll.u32 %s13, 4
      %s67 = int_to_ptr.hbm [resolvable:$true] %s66
      %s68 = sshll.u32 [#allocation5], 4
      %s69 = int_to_ptr.vmem [resolvable:$true] %s68
      %74 = dma.hbm_to_vmem [thread:$0]  %s67, 3072, %s69, [#allocation6], 128, 128, 8
    $region57: #{_lambda_.1} parent=1 // pred_fallthru
      _
    // Predicated region
    $region58: #{_lambda_.1} parent=1 // pred_check
      _
    $region59: #{_lambda_.1} parent=1 // pred_check_branch
      %76 = sbr.rel (0) target = $region61
    $region60: #{_lambda_.1} parent=1 // pred_region
      _
    $region61: #{_lambda_.1} parent=1 // pred_fallthru
      _
    // Predicated region
    $region62: #{_lambda_.1} parent=1 // pred_check
      _
    $region63: #{_lambda_.1} parent=1 // pred_check_branch
      %78 = sbr.rel (0) target = $region65
    $region64: #{_lambda_.1} parent=1 // pred_region
      %80 = dma.done [#allocation3], 3072
    $region65: #{_lambda_.1} parent=1 // pred_fallthru
      _
    // Predicated region
    $region66: #{_lambda_.1} parent=1 // pred_check
      _
    $region67: #{_lambda_.1} parent=1 // pred_check_branch
      %82 = sbr.rel (0) target = $region69
    $region68: #{_lambda_.1} parent=1 // pred_region
      %84 = dma.done [#allocation6], 3072
    $region69: #{_lambda_.1} parent=1 // pred_fallthru
      _
    %v85 = vld [vmem:[%s0] sm:$0xff]
    %v86 = vmul.f32 %v85, %v85
    %87 = vadd.xlane.f32.xlu0 %v86
    %v88 = vpop.xlane.xlu0 %87
    %v89 = vrcp.pop 128.0
    %v90 = vmul.f32 128.0, %v89
    %v91 = vsub.f32 1.0, %v90
    %v92 = vmul.f32 %v89, %v91
    %v93 = vadd.f32 %v89, %v92
    %vm94 = vweird.f32 %v89
    %v95 = vsel %vm94, %v89, %v93
    %v96 = vmul.f32 %v88, %v95
    %v97 = vadd.f32 %v96, 1e-08
    %v98 = vrsqrt.pop %v97
    %v99 = vmul.f32 %v98, %v97
    %v100 = vmul.f32 %v99, %v98
    %v101 = vmul.f32 0.5, %v100
    %v102 = vsub.f32 1.5, %v101
    %v103 = vmul.f32 %v98, %v102
    %vm104 = vweird.f32 %v97
    %vm105 = vweird.f32 %v98
    %vm106 = vmor %vm104, %vm105
    %v107 = vsel %vm106, %v98, %v103
    %v108 = vmul.f32 %v85, %v107
    %v109 = vld [vmem:[%s1] sm:$0xff]
    %v110 = vld [vmem:[%s1 + $0x8] sm:$0xff]
    %v111 = vld [vmem:[%s1 + $0x10] sm:$0xff]
    %v112 = vld [vmem:[%s1 + $0x18] sm:$0xff]
    %v113 = vld [vmem:[%s1 + $0x20] sm:$0xff]
    %v114 = vld [vmem:[%s1 + $0x28] sm:$0xff]
    %v115 = vld [vmem:[%s1 + $0x30] sm:$0xff]
    %v116 = vld [vmem:[%s1 + $0x38] sm:$0xff]
    %v117 = vld [vmem:[%s1 + $0x40] sm:$0xff]
    %v118 = vld [vmem:[%s1 + $0x48] sm:$0xff]
    %v119 = vld [vmem:[%s1 + $0x50] sm:$0xff]
    %v120 = vld [vmem:[%s1 + $0x58] sm:$0xff]
    %v121 = vld [vmem:[%s1 + $0x60] sm:$0xff]
    %v122 = vld [vmem:[%s1 + $0x68] sm:$0xff]
    %v123 = vld [vmem:[%s1 + $0x70] sm:$0xff]
    %v124 = vld [vmem:[%s1 + $0x78] sm:$0xff]
    %v125 = vld [vmem:[%s2] sm:$0x1]
    %v127 = vperm.slane %v125, 0
    %129 = vmatpush.msra.mxu0 %v124
    %130 = vmatpush.msra.mxu0 %v123
    %131 = vmatpush.msra.mxu0 %v122
    %132 = vmatpush.msra.mxu0 %v121
    %133 = vmatpush.msra.mxu0 %v120
    %134 = vmatpush.msra.mxu0 %v119
    %135 = vmatpush.msra.mxu0 %v118
    %136 = vmatpush.msra.mxu0 %v117
    %137 = vmatpush.msra.mxu0 %v116
    %138 = vmatpush.msra.mxu0 %v115
    %139 = vmatpush.msra.mxu0 %v114
    %140 = vmatpush.msra.mxu0 %v113
    %141 = vmatpush.msra.mxu0 %v112
    %142 = vmatpush.msra.mxu0 %v111
    %143 = vmatpush.msra.mxu0 %v110
    %144 = vmatpush.msra.mxu0 %v109
    %145 = vmatmul.f32.gmra.mxu0 %v108
    %v146 = vpop.f32.mrf.mxu0
    %v147 = vadd.f32 %v127, %v146
    %148 = vdwg.mxu0
    %vm149 = vcmp.ge.f32.partialorder %v147, 0.0
    %v150 = vmul.f32 %v147, 0.2
    %v151 = vsel %vm149, %v147, %v150
    %v152 = vmul.f32 %v151, 1.4142135
    %s153 = scalar_lea.vmem %s1, 128
    %v154 = vld [vmem:[%s153] sm:$0xff]
    %v155 = vld [vmem:[%s153 + $0x8] sm:$0xff]
    %v156 = vld [vmem:[%s153 + $0x10] sm:$0xff]
    %v157 = vld [vmem:[%s153 + $0x18] sm:$0xff]
    %v158 = vld [vmem:[%s153 + $0x20] sm:$0xff]
    %v159 = vld [vmem:[%s153 + $0x28] sm:$0xff]
    %v160 = vld [vmem:[%s153 + $0x30] sm:$0xff]
    %v161 = vld [vmem:[%s153 + $0x38] sm:$0xff]
    %v162 = vld [vmem:[%s153 + $0x40] sm:$0xff]
    %v163 = vld [vmem:[%s153 + $0x48] sm:$0xff]
    %v164 = vld [vmem:[%s153 + $0x50] sm:$0xff]
    %v165 = vld [vmem:[%s153 + $0x58] sm:$0xff]
    %v166 = vld [vmem:[%s153 + $0x60] sm:$0xff]
    %v167 = vld [vmem:[%s153 + $0x68] sm:$0xff]
    %v168 = vld [vmem:[%s153 + $0x70] sm:$0xff]
    %v169 = vld [vmem:[%s153 + $0x78] sm:$0xff]
    %s170 = scalar_lea.vmem %s2, 1
    %v171 = vld [vmem:[%s170] sm:$0x1]
    %v173 = vperm.slane %v171, 0
    %175 = vmatpush.msra.mxu0 %v169
    %176 = vmatpush.msra.mxu0 %v168
    %177 = vmatpush.msra.mxu0 %v167
    %178 = vmatpush.msra.mxu0 %v166
    %179 = vmatpush.msra.mxu0 %v165
    %180 = vmatpush.msra.mxu0 %v164
    %181 = vmatpush.msra.mxu0 %v163
    %182 = vmatpush.msra.mxu0 %v162
    %183 = vmatpush.msra.mxu0 %v161
    %184 = vmatpush.msra.mxu0 %v160
    %185 = vmatpush.msra.mxu0 %v159
    %186 = vmatpush.msra.mxu0 %v158
    %187 = vmatpush.msra.mxu0 %v157
    %188 = vmatpush.msra.mxu0 %v156
    %189 = vmatpush.msra.mxu0 %v155
    %190 = vmatpush.msra.mxu0 %v154
    %191 = vmatmul.f32.gmra.mxu0 %v152
    %v192 = vpop.f32.mrf.mxu0
    %v193 = vadd.f32 %v173, %v192
    %194 = vdwg.mxu0
    %vm195 = vcmp.ge.f32.partialorder %v193, 0.0
    %v196 = vmul.f32 %v193, 0.2
    %v197 = vsel %vm195, %v193, %v196
    %v198 = vmul.f32 %v197, 1.4142135
    %s199 = scalar_lea.vmem %s1, 256
    %v200 = vld [vmem:[%s199] sm:$0xff]
    %v201 = vld [vmem:[%s199 + $0x8] sm:$0xff]
    %v202 = vld [vmem:[%s199 + $0x10] sm:$0xff]
    %v203 = vld [vmem:[%s199 + $0x18] sm:$0xff]
    %v204 = vld [vmem:[%s199 + $0x20] sm:$0xff]
    %v205 = vld [vmem:[%s199 + $0x28] sm:$0xff]
    %v206 = vld [vmem:[%s199 + $0x30] sm:$0xff]
    %v207 = vld [vmem:[%s199 + $0x38] sm:$0xff]
    %v208 = vld [vmem:[%s199 + $0x40] sm:$0xff]
    %v209 = vld [vmem:[%s199 + $0x48] sm:$0xff]
    %v210 = vld [vmem:[%s199 + $0x50] sm:$0xff]
    %v211 = vld [vmem:[%s199 + $0x58] sm:$0xff]
    %v212 = vld [vmem:[%s199 + $0x60] sm:$0xff]
    %v213 = vld [vmem:[%s199 + $0x68] sm:$0xff]
    %v214 = vld [vmem:[%s199 + $0x70] sm:$0xff]
    %v215 = vld [vmem:[%s199 + $0x78] sm:$0xff]
    %s216 = scalar_lea.vmem %s2, 2
    %v217 = vld [vmem:[%s216] sm:$0x1]
    %v219 = vperm.slane %v217, 0
    %221 = vmatpush.msra.mxu0 %v215
    %222 = vmatpush.msra.mxu0 %v214
    %223 = vmatpush.msra.mxu0 %v213
    %224 = vmatpush.msra.mxu0 %v212
    %225 = vmatpush.msra.mxu0 %v211
    %226 = vmatpush.msra.mxu0 %v210
    %227 = vmatpush.msra.mxu0 %v209
    %228 = vmatpush.msra.mxu0 %v208
    %229 = vmatpush.msra.mxu0 %v207
    %230 = vmatpush.msra.mxu0 %v206
    %231 = vmatpush.msra.mxu0 %v205
    %232 = vmatpush.msra.mxu0 %v204
    %233 = vmatpush.msra.mxu0 %v203
    %234 = vmatpush.msra.mxu0 %v202
    %235 = vmatpush.msra.mxu0 %v201
    %236 = vmatpush.msra.mxu0 %v200
    %237 = vmatmul.f32.gmra.mxu0 %v198
    %v238 = vpop.f32.mrf.mxu0
    %v239 = vadd.f32 %v219, %v238
    %240 = vdwg.mxu0
    %vm241 = vcmp.ge.f32.partialorder %v239, 0.0
    %v242 = vmul.f32 %v239, 0.2
    %v243 = vsel %vm241, %v239, %v242
    %v244 = vmul.f32 %v243, 1.4142135
    %s245 = scalar_lea.vmem %s1, 384
    %v246 = vld [vmem:[%s245] sm:$0xff]
    %v247 = vld [vmem:[%s245 + $0x8] sm:$0xff]
    %v248 = vld [vmem:[%s245 + $0x10] sm:$0xff]
    %v249 = vld [vmem:[%s245 + $0x18] sm:$0xff]
    %v250 = vld [vmem:[%s245 + $0x20] sm:$0xff]
    %v251 = vld [vmem:[%s245 + $0x28] sm:$0xff]
    %v252 = vld [vmem:[%s245 + $0x30] sm:$0xff]
    %v253 = vld [vmem:[%s245 + $0x38] sm:$0xff]
    %v254 = vld [vmem:[%s245 + $0x40] sm:$0xff]
    %v255 = vld [vmem:[%s245 + $0x48] sm:$0xff]
    %v256 = vld [vmem:[%s245 + $0x50] sm:$0xff]
    %v257 = vld [vmem:[%s245 + $0x58] sm:$0xff]
    %v258 = vld [vmem:[%s245 + $0x60] sm:$0xff]
    %v259 = vld [vmem:[%s245 + $0x68] sm:$0xff]
    %v260 = vld [vmem:[%s245 + $0x70] sm:$0xff]
    %v261 = vld [vmem:[%s245 + $0x78] sm:$0xff]
    %s262 = scalar_lea.vmem %s2, 3
    %v263 = vld [vmem:[%s262] sm:$0x1]
    %v265 = vperm.slane %v263, 0
    %267 = vmatpush.msra.mxu0 %v261
    %268 = vmatpush.msra.mxu0 %v260
    %269 = vmatpush.msra.mxu0 %v259
    %270 = vmatpush.msra.mxu0 %v258
    %271 = vmatpush.msra.mxu0 %v257
    %272 = vmatpush.msra.mxu0 %v256
    %273 = vmatpush.msra.mxu0 %v255
    %274 = vmatpush.msra.mxu0 %v254
    %275 = vmatpush.msra.mxu0 %v253
    %276 = vmatpush.msra.mxu0 %v252
    %277 = vmatpush.msra.mxu0 %v251
    %278 = vmatpush.msra.mxu0 %v250
    %279 = vmatpush.msra.mxu0 %v249
    %280 = vmatpush.msra.mxu0 %v248
    %281 = vmatpush.msra.mxu0 %v247
    %282 = vmatpush.msra.mxu0 %v246
    %283 = vmatmul.f32.gmra.mxu0 %v244
    %v284 = vpop.f32.mrf.mxu0
    %v285 = vadd.f32 %v265, %v284
    %286 = vdwg.mxu0
    %vm287 = vcmp.ge.f32.partialorder %v285, 0.0
    %v288 = vmul.f32 %v285, 0.2
    %v289 = vsel %vm287, %v285, %v288
    %v290 = vmul.f32 %v289, 1.4142135
    %v291 = vld [vmem:[%s4] sm:$0xff]
    %v292 = vld [vmem:[%s4 + $0x8] sm:$0xff]
    %v293 = vld [vmem:[%s4 + $0x10] sm:$0xff]
    %v294 = vld [vmem:[%s4 + $0x18] sm:$0xff]
    %v295 = vld [vmem:[%s4 + $0x20] sm:$0xff]
    %v296 = vld [vmem:[%s4 + $0x28] sm:$0xff]
    %v297 = vld [vmem:[%s4 + $0x30] sm:$0xff]
    %v298 = vld [vmem:[%s4 + $0x38] sm:$0xff]
    %v299 = vld [vmem:[%s4 + $0x40] sm:$0xff]
    %v300 = vld [vmem:[%s4 + $0x48] sm:$0xff]
    %v301 = vld [vmem:[%s4 + $0x50] sm:$0xff]
    %v302 = vld [vmem:[%s4 + $0x58] sm:$0xff]
    %v303 = vld [vmem:[%s4 + $0x60] sm:$0xff]
    %v304 = vld [vmem:[%s4 + $0x68] sm:$0xff]
    %v305 = vld [vmem:[%s4 + $0x70] sm:$0xff]
    %v306 = vld [vmem:[%s4 + $0x78] sm:$0xff]
    %v307 = vld [vmem:[%s5] sm:$0x1]
    %v309 = vperm.slane %v307, 0
    %311 = vmatpush.msra.mxu0 %v306
    %312 = vmatpush.msra.mxu0 %v305
    %313 = vmatpush.msra.mxu0 %v304
    %314 = vmatpush.msra.mxu0 %v303
    %315 = vmatpush.msra.mxu0 %v302
    %316 = vmatpush.msra.mxu0 %v301
    %317 = vmatpush.msra.mxu0 %v300
    %318 = vmatpush.msra.mxu0 %v299
    %319 = vmatpush.msra.mxu0 %v298
    %320 = vmatpush.msra.mxu0 %v297
    %321 = vmatpush.msra.mxu0 %v296
    %322 = vmatpush.msra.mxu0 %v295
    %323 = vmatpush.msra.mxu0 %v294
    %324 = vmatpush.msra.mxu0 %v293
    %325 = vmatpush.msra.mxu0 %v292
    %326 = vmatpush.msra.mxu0 %v291
    %327 = vmatmul.f32.gmra.mxu0 %v290
    %v328 = vpop.f32.mrf.mxu0
    %v329 = vadd.f32 %v309, %v328
    %330 = vdwg.mxu0
    %v331 = vld [vmem:[%s9] sm:$0xff]
    %v332 = vld [vmem:[%s9 + $0x8] sm:$0xff]
    %v333 = vld [vmem:[%s9 + $0x10] sm:$0xff]
    %v334 = vld [vmem:[%s9 + $0x18] sm:$0xff]
    %v335 = vld [vmem:[%s9 + $0x20] sm:$0xff]
    %v336 = vld [vmem:[%s9 + $0x28] sm:$0xff]
    %v337 = vld [vmem:[%s9 + $0x30] sm:$0xff]
    %v338 = vld [vmem:[%s9 + $0x38] sm:$0xff]
    %v339 = vld [vmem:[%s9 + $0x40] sm:$0xff]
    %v340 = vld [vmem:[%s9 + $0x48] sm:$0xff]
    %v341 = vld [vmem:[%s9 + $0x50] sm:$0xff]
    %v342 = vld [vmem:[%s9 + $0x58] sm:$0xff]
    %v343 = vld [vmem:[%s9 + $0x60] sm:$0xff]
    %v344 = vld [vmem:[%s9 + $0x68] sm:$0xff]
    %v345 = vld [vmem:[%s9 + $0x70] sm:$0xff]
    %v346 = vld [vmem:[%s9 + $0x78] sm:$0xff]
    %v347 = vld [vmem:[%s10] sm:$0x1]
    %v349 = vperm.slane %v347, 0
    %351 = vmatpush.msra.mxu0 %v346
    %352 = vmatpush.msra.mxu0 %v345
    %353 = vmatpush.msra.mxu0 %v344
    %354 = vmatpush.msra.mxu0 %v343
    %355 = vmatpush.msra.mxu0 %v342
    %356 = vmatpush.msra.mxu0 %v341
    %357 = vmatpush.msra.mxu0 %v340
    %358 = vmatpush.msra.mxu0 %v339
    %359 = vmatpush.msra.mxu0 %v338
    %360 = vmatpush.msra.mxu0 %v337
    %361 = vmatpush.msra.mxu0 %v336
    %362 = vmatpush.msra.mxu0 %v335
    %363 = vmatpush.msra.mxu0 %v334
    %364 = vmatpush.msra.mxu0 %v333
    %365 = vmatpush.msra.mxu0 %v332
    %366 = vmatpush.msra.mxu0 %v331
    %367 = vmatmul.f32.gmra.mxu0 %v290
    %v368 = vpop.f32.mrf.mxu0
    %v369 = vadd.f32 %v349, %v368
    %370 = vdwg.mxu0
    %v371 = vld [vmem:[#allocation2] sm:$0xff]
    %v372 = vld [vmem:[#allocation2 + $0x8] sm:$0xff]
    %v373 = vld [vmem:[#allocation2 + $0x10] sm:$0xff]
    %v374 = vld [vmem:[#allocation2 + $0x18] sm:$0xff]
    %v375 = vld [vmem:[#allocation2 + $0x20] sm:$0xff]
    %v376 = vld [vmem:[#allocation2 + $0x28] sm:$0xff]
    %v377 = vld [vmem:[#allocation2 + $0x30] sm:$0xff]
    %v378 = vld [vmem:[#allocation2 + $0x38] sm:$0xff]
    %v379 = vld [vmem:[#allocation2 + $0x40] sm:$0xff]
    %v380 = vld [vmem:[#allocation2 + $0x48] sm:$0xff]
    %v381 = vld [vmem:[#allocation2 + $0x50] sm:$0xff]
    %v382 = vld [vmem:[#allocation2 + $0x58] sm:$0xff]
    %v383 = vld [vmem:[#allocation2 + $0x60] sm:$0xff]
    %v384 = vld [vmem:[#allocation2 + $0x68] sm:$0xff]
    %v385 = vld [vmem:[#allocation2 + $0x70] sm:$0xff]
    %v386 = vld [vmem:[#allocation2 + $0x78] sm:$0xff]
    %v387 = vld [vmem:[#allocation2 + $0x80] sm:$0xff]
    %v388 = vld [vmem:[#allocation2 + $0x88] sm:$0xff]
    %v389 = vld [vmem:[#allocation2 + $0x90] sm:$0xff]
    %v390 = vld [vmem:[#allocation2 + $0x98] sm:$0xff]
    %v391 = vld [vmem:[#allocation2 + $0xa0] sm:$0xff]
    %v392 = vld [vmem:[#allocation2 + $0xa8] sm:$0xff]
    %v393 = vld [vmem:[#allocation2 + $0xb0] sm:$0xff]
    %v394 = vld [vmem:[#allocation2 + $0xb8] sm:$0xff]
    %v395 = vld [vmem:[%s7] sm:$0xff]
    %v396 = vld [vmem:[%s7 + $0x8] sm:$0xff]
    %v397 = vld [vmem:[%s7 + $0x10] sm:$0xff]
    %v398 = vld [vmem:[%s7 + $0x18] sm:$0xff]
    %v399 = vld [vmem:[%s7 + $0x20] sm:$0xff]
    %v400 = vld [vmem:[%s7 + $0x28] sm:$0xff]
    %v401 = vld [vmem:[%s7 + $0x30] sm:$0xff]
    %v402 = vld [vmem:[%s7 + $0x38] sm:$0xff]
    %404 = vrot.lane.b32.xlu0 %v329, 32
    %v405 = vpop.permute.xlu0 %404
    %407 = vrot.lane.b32.xlu0 %v329, 64
    %v408 = vpop.permute.xlu0 %407
    %410 = vrot.lane.b32.xlu0 %v329, 96
    %v411 = vpop.permute.xlu0 %410
    %vm413 = vcmask 261120
    %v414 = vsel %vm413, %v329, %v405
    %vm415 = vcmask 523264
    %v416 = vsel %vm415, %v414, %v408
    %vm417 = vcmask 785408
    %v418 = vsel %vm417, %v416, %v411
    %v419 = vperm.slane %v418, 0
    %v420 = vperm.slane %v329, 0
    %v421 = vmul.f32 %v371, %v419
    %v422 = vmul.f32 %v372, %v419
    %v423 = vmul.f32 %v373, %v420
    %v424 = vmul.f32 %v374, %v419
    %v425 = vmul.f32 %v375, %v419
    %v426 = vmul.f32 %v376, %v420
    %v427 = vmul.f32 %v377, %v419
    %v428 = vmul.f32 %v378, %v419
    %v429 = vmul.f32 %v379, %v420
    %v430 = vmul.f32 %v380, %v419
    %v431 = vmul.f32 %v381, %v419
    %v432 = vmul.f32 %v382, %v420
    %v433 = vmul.f32 %v421, %v421
    %v434 = vmul.f32 %v422, %v422
    %v435 = vmul.f32 %v423, %v423
    %v436 = vmul.f32 %v424, %v424
    %v437 = vmul.f32 %v425, %v425
    %v438 = vmul.f32 %v426, %v426
    %v439 = vmul.f32 %v427, %v427
    %v440 = vmul.f32 %v428, %v428
    %v441 = vmul.f32 %v429, %v429
    %v442 = vmul.f32 %v430, %v430
    %v443 = vmul.f32 %v431, %v431
    %v444 = vmul.f32 %v432, %v432
    %v445 = vadd.f32 %v433, %v434
    %v446 = vsel %vm413, %v435, 0.0
    %v447 = vadd.f32 %v445, %v446
    %448 = vadd.xlane.f32.xlu0 %v447
    %v449 = vpop.xlane.xlu0 %448
    %v450 = vadd.f32 %v436, %v437
    %v451 = vsel %vm413, %v438, 0.0
    %v452 = vadd.f32 %v450, %v451
    %453 = vadd.xlane.f32.xlu0 %v452
    %v454 = vpop.xlane.xlu0 %453
    %v455 = vadd.f32 %v439, %v440
    %v456 = vsel %vm413, %v441, 0.0
    %v457 = vadd.f32 %v455, %v456
    %458 = vadd.xlane.f32.xlu0 %v457
    %v459 = vpop.xlane.xlu0 %458
    %v460 = vadd.f32 %v442, %v443
    %v461 = vsel %vm413, %v444, 0.0
    %v462 = vadd.f32 %v460, %v461
    %463 = vadd.xlane.f32.xlu0 %v462
    %v464 = vpop.xlane.xlu0 %463
    %v465 = vadd.f32 %v449, 1e-08
    %v466 = vadd.f32 %v454, 1e-08
    %v467 = vadd.f32 %v459, 1e-08
    %v468 = vadd.f32 %v464, 1e-08
    %v469 = vrsqrt.pop %v465
    %v470 = vmul.f32 %v469, %v465
    %v471 = vmul.f32 %v470, %v469
    %v472 = vmul.f32 0.5, %v471
    %v473 = vsub.f32 1.5, %v472
    %v474 = vmul.f32 %v469, %v473
    %vm475 = vweird.f32 %v465
    %vm476 = vweird.f32 %v469
    %vm477 = vmor %vm475, %vm476
    %v478 = vsel %vm477, %v469, %v474
    %v479 = vrsqrt.pop %v466
    %v480 = vmul.f32 %v479, %v466
    %v481 = vmul.f32 %v480, %v479
    %v482 = vmul.f32 0.5, %v481
    %v483 = vsub.f32 1.5, %v482
    %v484 = vmul.f32 %v479, %v483
    %vm485 = vweird.f32 %v466
    %vm486 = vweird.f32 %v479
    %vm487 = vmor %vm485, %vm486
    %v488 = vsel %vm487, %v479, %v484
    %v489 = vrsqrt.pop %v467
    %v490 = vmul.f32 %v489, %v467
    %v491 = vmul.f32 %v490, %v489
    %v492 = vmul.f32 0.5, %v491
    %v493 = vsub.f32 1.5, %v492
    %v494 = vmul.f32 %v489, %v493
    %vm495 = vweird.f32 %v467
    %vm496 = vweird.f32 %v489
    %vm497 = vmor %vm495, %vm496
    %v498 = vsel %vm497, %v489, %v494
    %v499 = vrsqrt.pop %v468
    %v500 = vmul.f32 %v499, %v468
    %v501 = vmul.f32 %v500, %v499
    %v502 = vmul.f32 0.5, %v501
    %v503 = vsub.f32 1.5, %v502
    %v504 = vmul.f32 %v499, %v503
    %vm505 = vweird.f32 %v468
    %vm506 = vweird.f32 %v499
    %vm507 = vmor %vm505, %vm506
    %v508 = vsel %vm507, %v499, %v504
    %v509 = vmul.f32 %v421, %v478
    %v510 = vmul.f32 %v422, %v478
    %v511 = vmul.f32 %v423, %v478
    %v512 = vmul.f32 %v424, %v488
    %v513 = vmul.f32 %v425, %v488
    %v514 = vmul.f32 %v426, %v488
    %v515 = vmul.f32 %v427, %v498
    %v516 = vmul.f32 %v428, %v498
    %v517 = vmul.f32 %v429, %v498
    %v518 = vmul.f32 %v430, %v508
    %v519 = vmul.f32 %v431, %v508
    %v520 = vmul.f32 %v432, %v508
    %v521 = vperm.slane %v418, 1
    %v522 = vperm.slane %v329, 1
    %v523 = vmul.f32 %v371, %v521
    %v524 = vmul.f32 %v372, %v521
    %v525 = vmul.f32 %v373, %v522
    %v526 = vmul.f32 %v374, %v521
    %v527 = vmul.f32 %v375, %v521
    %v528 = vmul.f32 %v376, %v522
    %v529 = vmul.f32 %v377, %v521
    %v530 = vmul.f32 %v378, %v521
    %v531 = vmul.f32 %v379, %v522
    %v532 = vmul.f32 %v380, %v521
    %v533 = vmul.f32 %v381, %v521
    %v534 = vmul.f32 %v382, %v522
    %v535 = vmul.f32 %v523, %v523
    %v536 = vmul.f32 %v524, %v524
    %v537 = vmul.f32 %v525, %v525
    %v538 = vmul.f32 %v526, %v526
    %v539 = vmul.f32 %v527, %v527
    %v540 = vmul.f32 %v528, %v528
    %v541 = vmul.f32 %v529, %v529
    %v542 = vmul.f32 %v530, %v530
    %v543 = vmul.f32 %v531, %v531
    %v544 = vmul.f32 %v532, %v532
    %v545 = vmul.f32 %v533, %v533
    %v546 = vmul.f32 %v534, %v534
    %v547 = vadd.f32 %v535, %v536
    %v548 = vsel %vm413, %v537, 0.0
    %v549 = vadd.f32 %v547, %v548
    %550 = vadd.xlane.f32.xlu0 %v549
    %v551 = vpop.xlane.xlu0 %550
    %v552 = vadd.f32 %v538, %v539
    %v553 = vsel %vm413, %v540, 0.0
    %v554 = vadd.f32 %v552, %v553
    %555 = vadd.xlane.f32.xlu0 %v554
    %v556 = vpop.xlane.xlu0 %555
    %v557 = vadd.f32 %v541, %v542
    %v558 = vsel %vm413, %v543, 0.0
    %v559 = vadd.f32 %v557, %v558
    %560 = vadd.xlane.f32.xlu0 %v559
    %v561 = vpop.xlane.xlu0 %560
    %v562 = vadd.f32 %v544, %v545
    %v563 = vsel %vm413, %v546, 0.0
    %v564 = vadd.f32 %v562, %v563
    %565 = vadd.xlane.f32.xlu0 %v564
    %v566 = vpop.xlane.xlu0 %565
    %v567 = vadd.f32 %v551, 1e-08
    %v568 = vadd.f32 %v556, 1e-08
    %v569 = vadd.f32 %v561, 1e-08
    %v570 = vadd.f32 %v566, 1e-08
    %v571 = vrsqrt.pop %v567
    %v572 = vmul.f32 %v571, %v567
    %v573 = vmul.f32 %v572, %v571
    %v574 = vmul.f32 0.5, %v573
    %v575 = vsub.f32 1.5, %v574
    %v576 = vmul.f32 %v571, %v575
    %vm577 = vweird.f32 %v567
    %vm578 = vweird.f32 %v571
    %vm579 = vmor %vm577, %vm578
    %v580 = vsel %vm579, %v571, %v576
    %v581 = vrsqrt.pop %v568
    %v582 = vmul.f32 %v581, %v568
    %v583 = vmul.f32 %v582, %v581
    %v584 = vmul.f32 0.5, %v583
    %v585 = vsub.f32 1.5, %v584
    %v586 = vmul.f32 %v581, %v585
    %vm587 = vweird.f32 %v568
    %vm588 = vweird.f32 %v581
    %vm589 = vmor %vm587, %vm588
    %v590 = vsel %vm589, %v581, %v586
    %v591 = vrsqrt.pop %v569
    %v592 = vmul.f32 %v591, %v569
    %v593 = vmul.f32 %v592, %v591
    %v594 = vmul.f32 0.5, %v593
    %v595 = vsub.f32 1.5, %v594
    %v596 = vmul.f32 %v591, %v595
    %vm597 = vweird.f32 %v569
    %vm598 = vweird.f32 %v591
    %vm599 = vmor %vm597, %vm598
    %v600 = vsel %vm599, %v591, %v596
    %v601 = vrsqrt.pop %v570
    %v602 = vmul.f32 %v601, %v570
    %v603 = vmul.f32 %v602, %v601
    %v604 = vmul.f32 0.5, %v603
    %v605 = vsub.f32 1.5, %v604
    %v606 = vmul.f32 %v601, %v605
    %vm607 = vweird.f32 %v570
    %vm608 = vweird.f32 %v601
    %vm609 = vmor %vm607, %vm608
    %v610 = vsel %vm609, %v601, %v606
    %v611 = vmul.f32 %v523, %v580
    %v612 = vmul.f32 %v524, %v580
    %v613 = vmul.f32 %v525, %v580
    %v614 = vmul.f32 %v526, %v590
    %v615 = vmul.f32 %v527, %v590
    %v616 = vmul.f32 %v528, %v590
    %v617 = vmul.f32 %v529, %v600
    %v618 = vmul.f32 %v530, %v600
    %v619 = vmul.f32 %v531, %v600
    %v620 = vmul.f32 %v532, %v610
    %v621 = vmul.f32 %v533, %v610
    %v622 = vmul.f32 %v534, %v610
    %v623 = vsel %vm413, %v411, %v329
    %v624 = vsel %vm415, %v623, %v405
    %v625 = vsel %vm417, %v624, %v408
    %v626 = vperm.slane %v625, 0
    %v627 = vperm.slane %v411, 0
    %v628 = vmul.f32 %v383, %v626
    %v629 = vmul.f32 %v384, %v626
    %v630 = vmul.f32 %v385, %v627
    %v631 = vmul.f32 %v386, %v626
    %v632 = vmul.f32 %v387, %v626
    %v633 = vmul.f32 %v388, %v627
    %v634 = vmul.f32 %v389, %v626
    %v635 = vmul.f32 %v390, %v626
    %v636 = vmul.f32 %v391, %v627
    %v637 = vmul.f32 %v392, %v626
    %v638 = vmul.f32 %v393, %v626
    %v639 = vmul.f32 %v394, %v627
    %v640 = vmul.f32 %v628, %v628
    %v641 = vmul.f32 %v629, %v629
    %v642 = vmul.f32 %v630, %v630
    %v643 = vmul.f32 %v631, %v631
    %v644 = vmul.f32 %v632, %v632
    %v645 = vmul.f32 %v633, %v633
    %v646 = vmul.f32 %v634, %v634
    %v647 = vmul.f32 %v635, %v635
    %v648 = vmul.f32 %v636, %v636
    %v649 = vmul.f32 %v637, %v637
    %v650 = vmul.f32 %v638, %v638
    %v651 = vmul.f32 %v639, %v639
    %v652 = vadd.f32 %v640, %v641
    %v653 = vsel %vm413, %v642, 0.0
    %v654 = vadd.f32 %v652, %v653
    %655 = vadd.xlane.f32.xlu0 %v654
    %v656 = vpop.xlane.xlu0 %655
    %v657 = vadd.f32 %v643, %v644
    %v658 = vsel %vm413, %v645, 0.0
    %v659 = vadd.f32 %v657, %v658
    %660 = vadd.xlane.f32.xlu0 %v659
    %v661 = vpop.xlane.xlu0 %660
    %v662 = vadd.f32 %v646, %v647
    %v663 = vsel %vm413, %v648, 0.0
    %v664 = vadd.f32 %v662, %v663
    %665 = vadd.xlane.f32.xlu0 %v664
    %v666 = vpop.xlane.xlu0 %665
    %v667 = vadd.f32 %v649, %v650
    %v668 = vsel %vm413, %v651, 0.0
    %v669 = vadd.f32 %v667, %v668
    %670 = vadd.xlane.f32.xlu0 %v669
    %v671 = vpop.xlane.xlu0 %670
    %v672 = vadd.f32 %v656, 1e-08
    %v673 = vadd.f32 %v661, 1e-08
    %v674 = vadd.f32 %v666, 1e-08
    %v675 = vadd.f32 %v671, 1e-08
    %v676 = vrsqrt.pop %v672
    %v677 = vmul.f32 %v676, %v672
    %v678 = vmul.f32 %v677, %v676
    %v679 = vmul.f32 0.5, %v678
    %v680 = vsub.f32 1.5, %v679
    %v681 = vmul.f32 %v676, %v680
    %vm682 = vweird.f32 %v672
    %vm683 = vweird.f32 %v676
    %vm684 = vmor %vm682, %vm683
    %v685 = vsel %vm684, %v676, %v681
    %v686 = vrsqrt.pop %v673
    %v687 = vmul.f32 %v686, %v673
    %v688 = vmul.f32 %v687, %v686
    %v689 = vmul.f32 0.5, %v688
    %v690 = vsub.f32 1.5, %v689
    %v691 = vmul.f32 %v686, %v690
    %vm692 = vweird.f32 %v673
    %vm693 = vweird.f32 %v686
    %vm694 = vmor %vm692, %vm693
    %v695 = vsel %vm694, %v686, %v691
    %v696 = vrsqrt.pop %v674
    %v697 = vmul.f32 %v696, %v674
    %v698 = vmul.f32 %v697, %v696
    %v699 = vmul.f32 0.5, %v698
    %v700 = vsub.f32 1.5, %v699
    %v701 = vmul.f32 %v696, %v700
    %vm702 = vweird.f32 %v674
    %vm703 = vweird.f32 %v696
    %vm704 = vmor %vm702, %vm703
    %v705 = vsel %vm704, %v696, %v701
    %v706 = vrsqrt.pop %v675
    %v707 = vmul.f32 %v706, %v675
    %v708 = vmul.f32 %v707, %v706
    %v709 = vmul.f32 0.5, %v708
    %v710 = vsub.f32 1.5, %v709
    %v711 = vmul.f32 %v706, %v710
    %vm712 = vweird.f32 %v675
    %vm713 = vweird.f32 %v706
    %vm714 = vmor %vm712, %vm713
    %v715 = vsel %vm714, %v706, %v711
    %v716 = vmul.f32 %v628, %v685
    %v717 = vmul.f32 %v629, %v685
    %v718 = vmul.f32 %v630, %v685
    %v719 = vmul.f32 %v631, %v695
    %v720 = vmul.f32 %v632, %v695
    %v721 = vmul.f32 %v633, %v695
    %v722 = vmul.f32 %v634, %v705
    %v723 = vmul.f32 %v635, %v705
    %v724 = vmul.f32 %v636, %v705
    %v725 = vmul.f32 %v637, %v715
    %v726 = vmul.f32 %v638, %v715
    %v727 = vmul.f32 %v639, %v715
    %v728 = vperm.slane %v625, 1
    %v729 = vperm.slane %v411, 1
    %v730 = vmul.f32 %v383, %v728
    %v731 = vmul.f32 %v384, %v728
    %v732 = vmul.f32 %v385, %v729
    %v733 = vmul.f32 %v386, %v728
    %v734 = vmul.f32 %v387, %v728
    %v735 = vmul.f32 %v388, %v729
    %v736 = vmul.f32 %v389, %v728
    %v737 = vmul.f32 %v390, %v728
    %v738 = vmul.f32 %v391, %v729
    %v739 = vmul.f32 %v392, %v728
    %v740 = vmul.f32 %v393, %v728
    %v741 = vmul.f32 %v394, %v729
    %v742 = vmul.f32 %v730, %v730
    %v743 = vmul.f32 %v731, %v731
    %v744 = vmul.f32 %v732, %v732
    %v745 = vmul.f32 %v733, %v733
    %v746 = vmul.f32 %v734, %v734
    %v747 = vmul.f32 %v735, %v735
    %v748 = vmul.f32 %v736, %v736
    %v749 = vmul.f32 %v737, %v737
    %v750 = vmul.f32 %v738, %v738
    %v751 = vmul.f32 %v739, %v739
    %v752 = vmul.f32 %v740, %v740
    %v753 = vmul.f32 %v741, %v741
    %v754 = vadd.f32 %v742, %v743
    %v755 = vsel %vm413, %v744, 0.0
    %v756 = vadd.f32 %v754, %v755
    %757 = vadd.xlane.f32.xlu0 %v756
    %v758 = vpop.xlane.xlu0 %757
    %v759 = vadd.f32 %v745, %v746
    %v760 = vsel %vm413, %v747, 0.0
    %v761 = vadd.f32 %v759, %v760
    %762 = vadd.xlane.f32.xlu0 %v761
    %v763 = vpop.xlane.xlu0 %762
    %v764 = vadd.f32 %v748, %v749
    %v765 = vsel %vm413, %v750, 0.0
    %v766 = vadd.f32 %v764, %v765
    %767 = vadd.xlane.f32.xlu0 %v766
    %v768 = vpop.xlane.xlu0 %767
    %v769 = vadd.f32 %v751, %v752
    %v770 = vsel %vm413, %v753, 0.0
    %v771 = vadd.f32 %v769, %v770
    %772 = vadd.xlane.f32.xlu0 %v771
    %v773 = vpop.xlane.xlu0 %772
    %v774 = vadd.f32 %v758, 1e-08
    %v775 = vadd.f32 %v763, 1e-08
    %v776 = vadd.f32 %v768, 1e-08
    %v777 = vadd.f32 %v773, 1e-08
    %v778 = vrsqrt.pop %v774
    %v779 = vmul.f32 %v778, %v774
    %v780 = vmul.f32 %v779, %v778
    %v781 = vmul.f32 0.5, %v780
    %v782 = vsub.f32 1.5, %v781
    %v783 = vmul.f32 %v778, %v782
    %vm784 = vweird.f32 %v774
    %vm785 = vweird.f32 %v778
    %vm786 = vmor %vm784, %vm785
    %v787 = vsel %vm786, %v778, %v783
    %v788 = vrsqrt.pop %v775
    %v789 = vmul.f32 %v788, %v775
    %v790 = vmul.f32 %v789, %v788
    %v791 = vmul.f32 0.5, %v790
    %v792 = vsub.f32 1.5, %v791
    %v793 = vmul.f32 %v788, %v792
    %vm794 = vweird.f32 %v775
    %vm795 = vweird.f32 %v788
    %vm796 = vmor %vm794, %vm795
    %v797 = vsel %vm796, %v788, %v793
    %v798 = vrsqrt.pop %v776
    %v799 = vmul.f32 %v798, %v776
    %v800 = vmul.f32 %v799, %v798
    %v801 = vmul.f32 0.5, %v800
    %v802 = vsub.f32 1.5, %v801
    %v803 = vmul.f32 %v798, %v802
    %vm804 = vweird.f32 %v776
    %vm805 = vweird.f32 %v798
    %vm806 = vmor %vm804, %vm805
    %v807 = vsel %vm806, %v798, %v803
    %v808 = vrsqrt.pop %v777
    %v809 = vmul.f32 %v808, %v777
    %v810 = vmul.f32 %v809, %v808
    %v811 = vmul.f32 0.5, %v810
    %v812 = vsub.f32 1.5, %v811
    %v813 = vmul.f32 %v808, %v812
    %vm814 = vweird.f32 %v777
    %vm815 = vweird.f32 %v808
    %vm816 = vmor %vm814, %vm815
    %v817 = vsel %vm816, %v808, %v813
    %v818 = vmul.f32 %v730, %v787
    %v819 = vmul.f32 %v731, %v787
    %v820 = vmul.f32 %v732, %v787
    %v821 = vmul.f32 %v733, %v797
    %v822 = vmul.f32 %v734, %v797
    %v823 = vmul.f32 %v735, %v797
    %v824 = vmul.f32 %v736, %v807
    %v825 = vmul.f32 %v737, %v807
    %v826 = vmul.f32 %v738, %v807
    %v827 = vmul.f32 %v739, %v817
    %v828 = vmul.f32 %v740, %v817
    %v829 = vmul.f32 %v741, %v817
    %v830 = vld [vmem:[%s8] sm:$0xff]
    %v831 = vld [vmem:[%s8 + $0x8] sm:$0xff]
    %v832 = vld [vmem:[%s8 + $0x10] sm:$0xff]
    %v833 = vld [vmem:[%s8 + $0x18] sm:$0xff]
    %v834 = vld [vmem:[%s8 + $0x20] sm:$0xff]
    %v835 = vld [vmem:[%s8 + $0x28] sm:$0xff]
    %v836 = vld [vmem:[%s8 + $0x30] sm:$0xff]
    %v837 = vld [vmem:[%s8 + $0x38] sm:$0xff]
    %v838 = vld [vmem:[%s8 + $0x40] sm:$0xff]
    %v839 = vld [vmem:[%s8 + $0x48] sm:$0xff]
    %v840 = vld [vmem:[%s8 + $0x50] sm:$0xff]
    %v841 = vld [vmem:[%s8 + $0x58] sm:$0xff]
    %v842 = vld [vmem:[%s8 + $0x60] sm:$0xff]
    %v843 = vld [vmem:[%s8 + $0x68] sm:$0xff]
    %v844 = vld [vmem:[%s8 + $0x70] sm:$0xff]
    %v845 = vld [vmem:[%s8 + $0x78] sm:$0xff]
    %v846 = vld [vmem:[%s8 + $0x80] sm:$0xff]
    %v847 = vld [vmem:[%s8 + $0x88] sm:$0xff]
    %v848 = vld [vmem:[%s8 + $0x90] sm:$0xff]
    %v849 = vld [vmem:[%s8 + $0x98] sm:$0xff]
    %v850 = vld [vmem:[%s8 + $0xa0] sm:$0xff]
    %v851 = vld [vmem:[%s8 + $0xa8] sm:$0xff]
    %v852 = vld [vmem:[%s8 + $0xb0] sm:$0xff]
    %v853 = vld [vmem:[%s8 + $0xb8] sm:$0xff]
    %v854 = vld [vmem:[%s8 + $0xc0] sm:$0xff]
    %v855 = vld [vmem:[%s8 + $0xc8] sm:$0xff]
    %v856 = vld [vmem:[%s8 + $0xd0] sm:$0xff]
    %v857 = vld [vmem:[%s8 + $0xd8] sm:$0xff]
    %v858 = vld [vmem:[%s8 + $0xe0] sm:$0xff]
    %v859 = vld [vmem:[%s8 + $0xe8] sm:$0xff]
    %v860 = vld [vmem:[%s8 + $0xf0] sm:$0xff]
    %v861 = vld [vmem:[%s8 + $0xf8] sm:$0xff]
    %v862 = vld [vmem:[%s8 + $0x100] sm:$0xff]
    %v863 = vld [vmem:[%s8 + $0x108] sm:$0xff]
    %v864 = vld [vmem:[%s8 + $0x110] sm:$0xff]
    %v865 = vld [vmem:[%s8 + $0x118] sm:$0xff]
    %867 = vset.pattern.permute.xlu0 0
    %868 = vperm.xlu0 %867, %v395
    %v869 = vpop.permute.xlu0 %868
    %872 = vset.pattern.permute.xlu0 0
    %873 = vperm.xlu0 %872, %v396
    %v874 = vpop.permute.xlu0 %873
    %877 = vset.pattern.permute.xlu0 0
    %878 = vperm.xlu0 %877, %v397
    %v879 = vpop.permute.xlu0 %878
    %882 = vset.pattern.permute.xlu0 0
    %883 = vperm.xlu0 %882, %v398
    %v884 = vpop.permute.xlu0 %883
    %887 = vset.pattern.permute.xlu0 0
    %888 = vperm.xlu0 %887, %v399
    %v889 = vpop.permute.xlu0 %888
    %892 = vset.pattern.permute.xlu0 0
    %893 = vperm.xlu0 %892, %v400
    %v894 = vpop.permute.xlu0 %893
    %897 = vset.pattern.permute.xlu0 0
    %898 = vperm.xlu0 %897, %v401
    %v899 = vpop.permute.xlu0 %898
    %902 = vset.pattern.permute.xlu0 0
    %903 = vperm.xlu0 %902, %v402
    %v904 = vpop.permute.xlu0 %903
    %v907 = vsel %vm413, %v511, 0
    %v910 = vsel %vm413, %v514, 0
    %v913 = vsel %vm413, %v517, 0
    %v916 = vsel %vm413, %v520, 0
    %v919 = vsel %vm413, %v613, 0
    %v922 = vsel %vm413, %v616, 0
    %v925 = vsel %vm413, %v619, 0
    %v928 = vsel %vm413, %v622, 0
    %v931 = vsel %vm413, %v718, 0
    %v934 = vsel %vm413, %v721, 0
    %v937 = vsel %vm413, %v724, 0
    %v940 = vsel %vm413, %v727, 0
    %v943 = vsel %vm413, %v820, 0
    %v946 = vsel %vm413, %v823, 0
    %v949 = vsel %vm413, %v826, 0
    %v952 = vsel %vm413, %v829, 0
    %954 = vmatpush.msra.mxu0 %v845
    %955 = vmatpush.msra.mxu0 %v844
    %956 = vmatpush.msra.mxu0 %v843
    %957 = vmatpush.msra.mxu0 %v842
    %958 = vmatpush.msra.mxu0 %v841
    %959 = vmatpush.msra.mxu0 %v840
    %960 = vmatpush.msra.mxu0 %v839
    %961 = vmatpush.msra.mxu0 %v838
    %962 = vmatpush.msra.mxu0 %v837
    %963 = vmatpush.msra.mxu0 %v836
    %964 = vmatpush.msra.mxu0 %v835
    %965 = vmatpush.msra.mxu0 %v834
    %966 = vmatpush.msra.mxu0 %v833
    %967 = vmatpush.msra.mxu0 %v832
    %968 = vmatpush.msra.mxu0 %v831
    %969 = vmatpush.msra.mxu0 %v830
    %970 = vmatmul.f32.gmra.mxu0 %v509
    %v971 = vpop.f32.mrf.mxu0
    %v972 = vadd.f32 %v869, %v971
    %973 = vmatmul.f32.gmra.mxu0 %v512
    %v974 = vpop.f32.mrf.mxu0
    %v975 = vadd.f32 %v874, %v974
    %976 = vmatmul.f32.gmra.mxu0 %v515
    %v977 = vpop.f32.mrf.mxu0
    %v978 = vadd.f32 %v879, %v977
    %979 = vmatmul.f32.gmra.mxu0 %v518
    %v980 = vpop.f32.mrf.mxu0
    %v981 = vadd.f32 %v884, %v980
    %982 = vmatmul.f32.gmra.mxu0 %v611
    %v983 = vpop.f32.mrf.mxu0
    %v984 = vadd.f32 %v869, %v983
    %985 = vmatmul.f32.gmra.mxu0 %v614
    %v986 = vpop.f32.mrf.mxu0
    %v987 = vadd.f32 %v874, %v986
    %988 = vmatmul.f32.gmra.mxu0 %v617
    %v989 = vpop.f32.mrf.mxu0
    %v990 = vadd.f32 %v879, %v989
    %991 = vmatmul.f32.gmra.mxu0 %v620
    %v992 = vpop.f32.mrf.mxu0
    %v993 = vadd.f32 %v884, %v992
    %994 = vmatmul.f32.gmra.mxu0 %v716
    %v995 = vpop.f32.mrf.mxu0
    %v996 = vadd.f32 %v889, %v995
    %997 = vmatmul.f32.gmra.mxu0 %v719
    %v998 = vpop.f32.mrf.mxu0
    %v999 = vadd.f32 %v894, %v998
    %1000 = vmatmul.f32.gmra.mxu0 %v722
    %v1001 = vpop.f32.mrf.mxu0
    %v1002 = vadd.f32 %v899, %v1001
    %1003 = vmatmul.f32.gmra.mxu0 %v725
    %v1004 = vpop.f32.mrf.mxu0
    %v1005 = vadd.f32 %v904, %v1004
    %1006 = vmatmul.f32.gmra.mxu0 %v818
    %v1007 = vpop.f32.mrf.mxu0
    %v1008 = vadd.f32 %v889, %v1007
    %1009 = vmatmul.f32.gmra.mxu0 %v821
    %v1010 = vpop.f32.mrf.mxu0
    %v1011 = vadd.f32 %v894, %v1010
    %1012 = vmatmul.f32.gmra.mxu0 %v824
    %v1013 = vpop.f32.mrf.mxu0
    %v1014 = vadd.f32 %v899, %v1013
    %1015 = vmatmul.f32.gmra.mxu0 %v827
    %v1016 = vpop.f32.mrf.mxu0
    %v1017 = vadd.f32 %v904, %v1016
    %1018 = vdwg.mxu0
    %1019 = vmatpush.msra.mxu0 %v861
    %1020 = vmatpush.msra.mxu0 %v860
    %1021 = vmatpush.msra.mxu0 %v859
    %1022 = vmatpush.msra.mxu0 %v858
    %1023 = vmatpush.msra.mxu0 %v857
    %1024 = vmatpush.msra.mxu0 %v856
    %1025 = vmatpush.msra.mxu0 %v855
    %1026 = vmatpush.msra.mxu0 %v854
    %1027 = vmatpush.msra.mxu0 %v853
    %1028 = vmatpush.msra.mxu0 %v852
    %1029 = vmatpush.msra.mxu0 %v851
    %1030 = vmatpush.msra.mxu0 %v850
    %1031 = vmatpush.msra.mxu0 %v849
    %1032 = vmatpush.msra.mxu0 %v848
    %1033 = vmatpush.msra.mxu0 %v847
    %1034 = vmatpush.msra.mxu0 %v846
    %1035 = vmatmul.f32.gmra.mxu0 %v510
    %v1036 = vpop.f32.mrf.mxu0
    %v1037 = vadd.f32 %v972, %v1036
    %1038 = vmatmul.f32.gmra.mxu0 %v513
    %v1039 = vpop.f32.mrf.mxu0
    %v1040 = vadd.f32 %v975, %v1039
    %1041 = vmatmul.f32.gmra.mxu0 %v516
    %v1042 = vpop.f32.mrf.mxu0
    %v1043 = vadd.f32 %v978, %v1042
    %1044 = vmatmul.f32.gmra.mxu0 %v519
    %v1045 = vpop.f32.mrf.mxu0
    %v1046 = vadd.f32 %v981, %v1045
    %1047 = vmatmul.f32.gmra.mxu0 %v612
    %v1048 = vpop.f32.mrf.mxu0
    %v1049 = vadd.f32 %v984, %v1048
    %1050 = vmatmul.f32.gmra.mxu0 %v615
    %v1051 = vpop.f32.mrf.mxu0
    %v1052 = vadd.f32 %v987, %v1051
    %1053 = vmatmul.f32.gmra.mxu0 %v618
    %v1054 = vpop.f32.mrf.mxu0
    %v1055 = vadd.f32 %v990, %v1054
    %1056 = vmatmul.f32.gmra.mxu0 %v621
    %v1057 = vpop.f32.mrf.mxu0
    %v1058 = vadd.f32 %v993, %v1057
    %1059 = vmatmul.f32.gmra.mxu0 %v717
    %v1060 = vpop.f32.mrf.mxu0
    %v1061 = vadd.f32 %v996, %v1060
    %1062 = vmatmul.f32.gmra.mxu0 %v720
    %v1063 = vpop.f32.mrf.mxu0
    %v1064 = vadd.f32 %v999, %v1063
    %1065 = vmatmul.f32.gmra.mxu0 %v723
    %v1066 = vpop.f32.mrf.mxu0
    %v1067 = vadd.f32 %v1002, %v1066
    %1068 = vmatmul.f32.gmra.mxu0 %v726
    %v1069 = vpop.f32.mrf.mxu0
    %v1070 = vadd.f32 %v1005, %v1069
    %1071 = vmatmul.f32.gmra.mxu0 %v819
    %v1072 = vpop.f32.mrf.mxu0
    %v1073 = vadd.f32 %v1008, %v1072
    %1074 = vmatmul.f32.gmra.mxu0 %v822
    %v1075 = vpop.f32.mrf.mxu0
    %v1076 = vadd.f32 %v1011, %v1075
    %1077 = vmatmul.f32.gmra.mxu0 %v825
    %v1078 = vpop.f32.mrf.mxu0
    %v1079 = vadd.f32 %v1014, %v1078
    %1080 = vmatmul.f32.gmra.mxu0 %v828
    %v1081 = vpop.f32.mrf.mxu0
    %v1082 = vadd.f32 %v1017, %v1081
    %1083 = vdwg.mxu0
    %1084 = vmatpush.msra.mxu0 0.0
    %1085 = vmatpush.msra.mxu0 0.0
    %1086 = vmatpush.msra.mxu0 0.0
    %1087 = vmatpush.msra.mxu0 0.0
    %1088 = vmatpush.msra.mxu0 0.0
    %1089 = vmatpush.msra.mxu0 0.0
    %1090 = vmatpush.msra.mxu0 0.0
    %1091 = vmatpush.msra.mxu0 0.0
    %1092 = vmatpush.msra.mxu0 0.0
    %1093 = vmatpush.msra.mxu0 0.0
    %1094 = vmatpush.msra.mxu0 0.0
    %1095 = vmatpush.msra.mxu0 0.0
    %1096 = vmatpush.msra.mxu0 %v865
    %1097 = vmatpush.msra.mxu0 %v864
    %1098 = vmatpush.msra.mxu0 %v863
    %1099 = vmatpush.msra.mxu0 %v862
    %1100 = vmatmul.f32.gmra.mxu0 %v907
    %v1101 = vpop.f32.mrf.mxu0
    %v1102 = vadd.f32 %v1037, %v1101
    %1103 = vmatmul.f32.gmra.mxu0 %v910
    %v1104 = vpop.f32.mrf.mxu0
    %v1105 = vadd.f32 %v1040, %v1104
    %1106 = vmatmul.f32.gmra.mxu0 %v913
    %v1107 = vpop.f32.mrf.mxu0
    %v1108 = vadd.f32 %v1043, %v1107
    %1109 = vmatmul.f32.gmra.mxu0 %v916
    %v1110 = vpop.f32.mrf.mxu0
    %v1111 = vadd.f32 %v1046, %v1110
    %1112 = vmatmul.f32.gmra.mxu0 %v919
    %v1113 = vpop.f32.mrf.mxu0
    %v1114 = vadd.f32 %v1049, %v1113
    %1115 = vmatmul.f32.gmra.mxu0 %v922
    %v1116 = vpop.f32.mrf.mxu0
    %v1117 = vadd.f32 %v1052, %v1116
    %1118 = vmatmul.f32.gmra.mxu0 %v925
    %v1119 = vpop.f32.mrf.mxu0
    %v1120 = vadd.f32 %v1055, %v1119
    %1121 = vmatmul.f32.gmra.mxu0 %v928
    %v1122 = vpop.f32.mrf.mxu0
    %v1123 = vadd.f32 %v1058, %v1122
    %1124 = vmatmul.f32.gmra.mxu0 %v931
    %v1125 = vpop.f32.mrf.mxu0
    %v1126 = vadd.f32 %v1061, %v1125
    %1127 = vmatmul.f32.gmra.mxu0 %v934
    %v1128 = vpop.f32.mrf.mxu0
    %v1129 = vadd.f32 %v1064, %v1128
    %1130 = vmatmul.f32.gmra.mxu0 %v937
    %v1131 = vpop.f32.mrf.mxu0
    %v1132 = vadd.f32 %v1067, %v1131
    %1133 = vmatmul.f32.gmra.mxu0 %v940
    %v1134 = vpop.f32.mrf.mxu0
    %v1135 = vadd.f32 %v1070, %v1134
    %1136 = vmatmul.f32.gmra.mxu0 %v943
    %v1137 = vpop.f32.mrf.mxu0
    %v1138 = vadd.f32 %v1073, %v1137
    %1139 = vmatmul.f32.gmra.mxu0 %v946
    %v1140 = vpop.f32.mrf.mxu0
    %v1141 = vadd.f32 %v1076, %v1140
    %1142 = vmatmul.f32.gmra.mxu0 %v949
    %v1143 = vpop.f32.mrf.mxu0
    %v1144 = vadd.f32 %v1079, %v1143
    %1145 = vmatmul.f32.gmra.mxu0 %v952
    %v1146 = vpop.f32.mrf.mxu0
    %v1147 = vadd.f32 %v1082, %v1146
    %1148 = vdwg.mxu0
    %vm1149 = vcmp.ge.f32.partialorder %v1102, 0.0
    %vm1150 = vcmp.ge.f32.partialorder %v1105, 0.0
    %vm1151 = vcmp.ge.f32.partialorder %v1108, 0.0
    %vm1152 = vcmp.ge.f32.partialorder %v1111, 0.0
    %vm1153 = vcmp.ge.f32.partialorder %v1114, 0.0
    %vm1154 = vcmp.ge.f32.partialorder %v1117, 0.0
    %vm1155 = vcmp.ge.f32.partialorder %v1120, 0.0
    %vm1156 = vcmp.ge.f32.partialorder %v1123, 0.0
    %vm1157 = vcmp.ge.f32.partialorder %v1126, 0.0
    %vm1158 = vcmp.ge.f32.partialorder %v1129, 0.0
    %vm1159 = vcmp.ge.f32.partialorder %v1132, 0.0
    %vm1160 = vcmp.ge.f32.partialorder %v1135, 0.0
    %vm1161 = vcmp.ge.f32.partialorder %v1138, 0.0
    %vm1162 = vcmp.ge.f32.partialorder %v1141, 0.0
    %vm1163 = vcmp.ge.f32.partialorder %v1144, 0.0
    %vm1164 = vcmp.ge.f32.partialorder %v1147, 0.0
    %v1165 = vmul.f32 %v1102, 0.2
    %v1166 = vmul.f32 %v1105, 0.2
    %v1167 = vmul.f32 %v1108, 0.2
    %v1168 = vmul.f32 %v1111, 0.2
    %v1169 = vmul.f32 %v1114, 0.2
    %v1170 = vmul.f32 %v1117, 0.2
    %v1171 = vmul.f32 %v1120, 0.2
    %v1172 = vmul.f32 %v1123, 0.2
    %v1173 = vmul.f32 %v1126, 0.2
    %v1174 = vmul.f32 %v1129, 0.2
    %v1175 = vmul.f32 %v1132, 0.2
    %v1176 = vmul.f32 %v1135, 0.2
    %v1177 = vmul.f32 %v1138, 0.2
    %v1178 = vmul.f32 %v1141, 0.2
    %v1179 = vmul.f32 %v1144, 0.2
    %v1180 = vmul.f32 %v1147, 0.2
    %v1181 = vsel %vm1149, %v1102, %v1165
    %v1182 = vsel %vm1150, %v1105, %v1166
    %v1183 = vsel %vm1151, %v1108, %v1167
    %v1184 = vsel %vm1152, %v1111, %v1168
    %v1185 = vsel %vm1153, %v1114, %v1169
    %v1186 = vsel %vm1154, %v1117, %v1170
    %v1187 = vsel %vm1155, %v1120, %v1171
    %v1188 = vsel %vm1156, %v1123, %v1172
    %v1189 = vsel %vm1157, %v1126, %v1173
    %v1190 = vsel %vm1158, %v1129, %v1174
    %v1191 = vsel %vm1159, %v1132, %v1175
    %v1192 = vsel %vm1160, %v1135, %v1176
    %v1193 = vsel %vm1161, %v1138, %v1177
    %v1194 = vsel %vm1162, %v1141, %v1178
    %v1195 = vsel %vm1163, %v1144, %v1179
    %v1196 = vsel %vm1164, %v1147, %v1180
    %v1197 = vmul.f32 %v1181, 1.4142135
    %v1198 = vmul.f32 %v1182, 1.4142135
    %v1199 = vmul.f32 %v1183, 1.4142135
    %v1200 = vmul.f32 %v1184, 1.4142135
    %v1201 = vmul.f32 %v1185, 1.4142135
    %v1202 = vmul.f32 %v1186, 1.4142135
    %v1203 = vmul.f32 %v1187, 1.4142135
    %v1204 = vmul.f32 %v1188, 1.4142135
    %v1205 = vmul.f32 %v1189, 1.4142135
    %v1206 = vmul.f32 %v1190, 1.4142135
    %v1207 = vmul.f32 %v1191, 1.4142135
    %v1208 = vmul.f32 %v1192, 1.4142135
    %v1209 = vmul.f32 %v1193, 1.4142135
    %v1210 = vmul.f32 %v1194, 1.4142135
    %v1211 = vmul.f32 %v1195, 1.4142135
    %v1212 = vmul.f32 %v1196, 1.4142135
    %v1213 = vld [vmem:[%s11] sm:$0x3f]
    %v1214 = vld [vmem:[%s12] sm:$0x3f]
    %v1215 = vperm.slane %v369, 0
    %v1216 = vmul.f32 %v1213, %v1215
    %1218 = vset.pattern.permute.xlu0 0
    %1219 = vperm.xlu0 %1218, %v1214
    %v1220 = vpop.permute.xlu0 %1219
    %v1223 = vsel %vm413, %v1216, 0
    %1225 = vmatpush.msra.mxu0 0.0
    %1226 = vmatpush.msra.mxu0 0.0
    %1227 = vmatpush.msra.mxu0 0.0
    %1228 = vmatpush.msra.mxu0 0.0
    %1229 = vmatpush.msra.mxu0 0.0
    %1230 = vmatpush.msra.mxu0 0.0
    %1231 = vmatpush.msra.mxu0 0.0
    %1232 = vmatpush.msra.mxu0 0.0
    %1233 = vmatpush.msra.mxu0 0.0
    %1234 = vmatpush.msra.mxu0 0.0
    %1235 = vmatpush.msra.mxu0 0.0
    %1236 = vmatpush.msra.mxu0 0.0
    %1237 = vmatpush.msra.mxu0 %v1200
    %1238 = vmatpush.msra.mxu0 %v1199
    %1239 = vmatpush.msra.mxu0 %v1198
    %1240 = vmatpush.msra.mxu0 %v1197
    %1241 = vmatmul.f32.gmra.mxu0 %v1223
    %v1242 = vpop.f32.mrf.mxu0
    %v1243 = vadd.f32 %v1220, %v1242
    %1244 = vdwg.mxu0
    %v1245 = vperm.slane %v369, 1
    %v1246 = vmul.f32 %v1213, %v1245
    %v1248 = vsel %vm413, %v1246, 0
    %1250 = vmatpush.msra.mxu0 0.0
    %1251 = vmatpush.msra.mxu0 0.0
    %1252 = vmatpush.msra.mxu0 0.0
    %1253 = vmatpush.msra.mxu0 0.0
    %1254 = vmatpush.msra.mxu0 0.0
    %1255 = vmatpush.msra.mxu0 0.0
    %1256 = vmatpush.msra.mxu0 0.0
    %1257 = vmatpush.msra.mxu0 0.0
    %1258 = vmatpush.msra.mxu0 0.0
    %1259 = vmatpush.msra.mxu0 0.0
    %1260 = vmatpush.msra.mxu0 0.0
    %1261 = vmatpush.msra.mxu0 0.0
    %1262 = vmatpush.msra.mxu0 %v1204
    %1263 = vmatpush.msra.mxu0 %v1203
    %1264 = vmatpush.msra.mxu0 %v1202
    %1265 = vmatpush.msra.mxu0 %v1201
    %1266 = vmatmul.f32.gmra.mxu0 %v1248
    %v1267 = vpop.f32.mrf.mxu0
    %v1268 = vadd.f32 %v1220, %v1267
    %1269 = vdwg.mxu0
    %1271 = vrot.lane.b32.xlu0 %v1215, 96
    %v1272 = vpop.permute.xlu0 %1271
    %v1274 = vmul.f32 %v1213, %v1272
    %v1276 = vrot.slane %v1274, 3
    %v1277 = vrot.slane %v1220, 3
    %v1279 = vsel %vm413, %v1276, 0
    %1281 = vmatpush.msra.mxu0 0.0
    %1282 = vmatpush.msra.mxu0 0.0
    %1283 = vmatpush.msra.mxu0 0.0
    %1284 = vmatpush.msra.mxu0 0.0
    %1285 = vmatpush.msra.mxu0 0.0
    %1286 = vmatpush.msra.mxu0 0.0
    %1287 = vmatpush.msra.mxu0 0.0
    %1288 = vmatpush.msra.mxu0 0.0
    %1289 = vmatpush.msra.mxu0 0.0
    %1290 = vmatpush.msra.mxu0 0.0
    %1291 = vmatpush.msra.mxu0 0.0
    %1292 = vmatpush.msra.mxu0 0.0
    %1293 = vmatpush.msra.mxu0 %v1208
    %1294 = vmatpush.msra.mxu0 %v1207
    %1295 = vmatpush.msra.mxu0 %v1206
    %1296 = vmatpush.msra.mxu0 %v1205
    %1297 = vmatmul.f32.gmra.mxu0 %v1279
    %v1298 = vpop.f32.mrf.mxu0
    %v1299 = vadd.f32 %v1277, %v1298
    %1300 = vdwg.mxu0
    %1302 = vrot.lane.b32.xlu0 %v1245, 96
    %v1303 = vpop.permute.xlu0 %1302
    %v1305 = vmul.f32 %v1213, %v1303
    %v1307 = vrot.slane %v1305, 3
    %v1308 = vsel %vm413, %v1307, 0
    %1310 = vmatpush.msra.mxu0 0.0
    %1311 = vmatpush.msra.mxu0 0.0
    %1312 = vmatpush.msra.mxu0 0.0
    %1313 = vmatpush.msra.mxu0 0.0
    %1314 = vmatpush.msra.mxu0 0.0
    %1315 = vmatpush.msra.mxu0 0.0
    %1316 = vmatpush.msra.mxu0 0.0
    %1317 = vmatpush.msra.mxu0 0.0
    %1318 = vmatpush.msra.mxu0 0.0
    %1319 = vmatpush.msra.mxu0 0.0
    %1320 = vmatpush.msra.mxu0 0.0
    %1321 = vmatpush.msra.mxu0 0.0
    %1322 = vmatpush.msra.mxu0 %v1212
    %1323 = vmatpush.msra.mxu0 %v1211
    %1324 = vmatpush.msra.mxu0 %v1210
    %1325 = vmatpush.msra.mxu0 %v1209
    %1326 = vmatmul.f32.gmra.mxu0 %v1308
    %v1327 = vpop.f32.mrf.mxu0
    %v1328 = vadd.f32 %v1277, %v1327
    %1329 = vdwg.mxu0
    %v1331 = vrot.slane %v1268, 7
    %v1334 = vrot.slane %v1299, 6
    %v1337 = vrot.slane %v1328, 5
    %v1340 = vrot.slane %v1243, 5
    %v1342 = vrot.slane %v1268, 4
    %v1344 = vrot.slane %v1299, 3
    %v1346 = vrot.slane %v1328, 2
    %v1348 = vrot.slane %v1243, 2
    %v1350 = vrot.slane %v1268, 1
    %v1352 = vrot.slane %v1328, 7
    %vm1354 = vcmask 1040384
    %v1355 = vsel %vm1354, %v1243, %v1331
    %vm1356 = vcmask 1041408
    %v1357 = vsel %vm1356, %v1355, %v1334
    %vm1358 = vcmask 1042432
    %v1359 = vsel %vm1358, %v1357, %v1337
    %vm1360 = vcmask 1043456
    %v1361 = vsel %vm1360, %v1359, %v1340
    %vm1362 = vcmask 1044480
    %v1363 = vsel %vm1362, %v1361, %v1342
    %vm1364 = vcmask 1045504
    %v1365 = vsel %vm1364, %v1363, %v1344
    %vm1366 = vcmask 1046528
    %v1367 = vsel %vm1366, %v1365, %v1346
    %v1368 = vsel %vm1354, %v1348, %v1350
    %v1369 = vsel %vm1356, %v1368, %v1299
    %v1370 = vsel %vm1358, %v1369, %v1352
    %1371 = vst.msk [vmem:[%s15] sm:$0xff] %vm415, %v1367
    %vm1372 = vcmask 519168
    %1373 = vst.msk [vmem:[%s15 + $0x8] sm:$0xf] %vm1372, %v1370
    %v1374 = vld [vmem:[#allocation5] sm:$0xff]
    %v1375 = vld [vmem:[#allocation5 + $0x8] sm:$0xff]
    %v1376 = vld [vmem:[#allocation5 + $0x10] sm:$0xff]
    %v1377 = vld [vmem:[#allocation5 + $0x18] sm:$0xff]
    %v1378 = vld [vmem:[#allocation5 + $0x20] sm:$0xff]
    %v1379 = vld [vmem:[#allocation5 + $0x28] sm:$0xff]
    %v1380 = vld [vmem:[#allocation5 + $0x30] sm:$0xff]
    %v1381 = vld [vmem:[#allocation5 + $0x38] sm:$0xff]
    %v1382 = vld [vmem:[#allocation5 + $0x40] sm:$0xff]
    %v1383 = vld [vmem:[#allocation5 + $0x48] sm:$0xff]
    %v1384 = vld [vmem:[#allocation5 + $0x50] sm:$0xff]
    %v1385 = vld [vmem:[#allocation5 + $0x58] sm:$0xff]
    %v1386 = vld [vmem:[#allocation5 + $0x60] sm:$0xff]
    %v1387 = vld [vmem:[#allocation5 + $0x68] sm:$0xff]
    %v1388 = vld [vmem:[#allocation5 + $0x70] sm:$0xff]
    %v1389 = vld [vmem:[#allocation5 + $0x78] sm:$0xff]
    %v1390 = vld [vmem:[#allocation5 + $0x80] sm:$0xff]
    %v1391 = vld [vmem:[#allocation5 + $0x88] sm:$0xff]
    %v1392 = vld [vmem:[#allocation5 + $0x90] sm:$0xff]
    %v1393 = vld [vmem:[#allocation5 + $0x98] sm:$0xff]
    %v1394 = vld [vmem:[#allocation5 + $0xa0] sm:$0xff]
    %v1395 = vld [vmem:[#allocation5 + $0xa8] sm:$0xff]
    %v1396 = vld [vmem:[#allocation5 + $0xb0] sm:$0xff]
    %v1397 = vld [vmem:[#allocation5 + $0xb8] sm:$0xff]
    %v1399 = vrot.slane %v1367, 4
    %v1400 = vsel %vm415, %v1399, 0
    %1402 = vmatpush.msra.mxu0 0.0
    %1403 = vmatpush.msra.mxu0 0.0
    %1404 = vmatpush.msra.mxu0 0.0
    %1405 = vmatpush.msra.mxu0 0.0
    %1406 = vmatpush.msra.mxu0 0.0
    %1407 = vmatpush.msra.mxu0 0.0
    %1408 = vmatpush.msra.mxu0 0.0
    %1409 = vmatpush.msra.mxu0 0.0
    %1410 = vmatpush.msra.mxu0 %v1389
    %1411 = vmatpush.msra.mxu0 %v1388
    %1412 = vmatpush.msra.mxu0 %v1387
    %1413 = vmatpush.msra.mxu0 %v1386
    %1414 = vmatpush.msra.mxu0 %v1385
    %1415 = vmatpush.msra.mxu0 %v1384
    %1416 = vmatpush.msra.mxu0 %v1383
    %1417 = vmatpush.msra.mxu0 %v1382
    %1418 = vmatmul.f32.gmra.mxu0 %v1400
    %v1419 = vpop.f32.mrf.mxu0
    %v1420 = vadd.f32 0.0, %v1419
    %1421 = vdwg.mxu0
    %v1422 = vsel %vm415, %v1367, 0
    %1424 = vmatpush.msra.mxu0 0.0
    %1425 = vmatpush.msra.mxu0 0.0
    %1426 = vmatpush.msra.mxu0 0.0
    %1427 = vmatpush.msra.mxu0 0.0
    %1428 = vmatpush.msra.mxu0 0.0
    %1429 = vmatpush.msra.mxu0 0.0
    %1430 = vmatpush.msra.mxu0 0.0
    %1431 = vmatpush.msra.mxu0 0.0
    %1432 = vmatpush.msra.mxu0 %v1381
    %1433 = vmatpush.msra.mxu0 %v1380
    %1434 = vmatpush.msra.mxu0 %v1379
    %1435 = vmatpush.msra.mxu0 %v1378
    %1436 = vmatpush.msra.mxu0 %v1377
    %1437 = vmatpush.msra.mxu0 %v1376
    %1438 = vmatpush.msra.mxu0 %v1375
    %1439 = vmatpush.msra.mxu0 %v1374
    %1440 = vmatmul.f32.gmra.mxu0 %v1422
    %v1441 = vpop.f32.mrf.mxu0
    %v1442 = vadd.f32 %v1420, %v1441
    %1443 = vdwg.mxu0
    %v1445 = vsel %vm415, %v1370, 0
    %1447 = vmatpush.msra.mxu0 0.0
    %1448 = vmatpush.msra.mxu0 0.0
    %1449 = vmatpush.msra.mxu0 0.0
    %1450 = vmatpush.msra.mxu0 0.0
    %1451 = vmatpush.msra.mxu0 0.0
    %1452 = vmatpush.msra.mxu0 0.0
    %1453 = vmatpush.msra.mxu0 0.0
    %1454 = vmatpush.msra.mxu0 0.0
    %1455 = vmatpush.msra.mxu0 %v1397
    %1456 = vmatpush.msra.mxu0 %v1396
    %1457 = vmatpush.msra.mxu0 %v1395
    %1458 = vmatpush.msra.mxu0 %v1394
    %1459 = vmatpush.msra.mxu0 %v1393
    %1460 = vmatpush.msra.mxu0 %v1392
    %1461 = vmatpush.msra.mxu0 %v1391
    %1462 = vmatpush.msra.mxu0 %v1390
    %1463 = vmatmul.f32.gmra.mxu0 %v1445
    %v1464 = vpop.f32.mrf.mxu0
    %v1465 = vadd.f32 0.0, %v1464
    %1466 = vdwg.mxu0
    %v1467 = vadd.f32 %v1442, %v1465
    %v1468 = vld [vmem:[%s14] sm:$0x1]
    %v1469 = vmul.f32 %v1467, %v1467
    %v1470 = vsel %vm1372, %v1469, 0.0
    %1471 = vadd.xlane.f32.xlu0 %v1470
    %v1472 = vpop.xlane.xlu0 %1471
    %v1473 = vadd.f32 %v1472, 1e-12
    %v1474 = vrsqrt.pop %v1473
    %v1475 = vmul.f32 %v1474, %v1473
    %v1476 = vmul.f32 %v1475, %v1474
    %v1477 = vmul.f32 0.5, %v1476
    %v1478 = vsub.f32 1.5, %v1477
    %v1479 = vmul.f32 %v1474, %v1478
    %vm1480 = vweird.f32 %v1473
    %vm1481 = vweird.f32 %v1474
    %vm1482 = vmor %vm1480, %vm1481
    %v1483 = vsel %vm1482, %v1474, %v1479
    %v1484 = vmul.f32 %v1467, %v1483
    %v1486 = vrot.slane %v1484, 6
    %v1488 = vsub.f32 %v1484, %v1486
    %v1489 = vmul.f32 %v1488, %v1488
    %vm1490 = vcmask 519170
    %v1491 = vsel %vm1490, %v1489, 0.0
    %1492 = vadd.xlane.f32.xlu0 %v1491
    %v1493 = vpop.xlane.xlu0 %1492
    %v1494 = vadd.f32 %v1493, 1e-12
    %v1495 = vrsqrt.pop %v1494
    %v1496 = vmul.f32 %v1495, %v1494
    %v1497 = vmul.f32 %v1496, %v1495
    %v1498 = vmul.f32 0.5, %v1497
    %v1499 = vsub.f32 1.5, %v1498
    %v1500 = vmul.f32 %v1495, %v1499
    %vm1501 = vweird.f32 %v1494
    %vm1502 = vweird.f32 %v1495
    %vm1503 = vmor %vm1501, %vm1502
    %v1504 = vsel %vm1503, %v1495, %v1500
    %v1505 = vmul.f32 %v1488, %v1504
    %v1507 = vperm.slane %v1468, 0
    %v1509 = vmul.f32 %v1505, %v1507
    %v1510 = vsel %vm1490, %v1509, 0.0
    %1511 = vadd.xlane.f32.xlu0 %v1510
    %v1512 = vpop.xlane.xlu0 %1511
    %v1513 = vsub.f32 1.0, %v1512
    %v1515 = vrot.slane %v1513, 2
    %v1517 = vsel %vm1356, %v1515, 0.0
    %v1518 = vrot.slane %v1517, 4
    %v1519 = vadd.f32 %v1517, %v1518
    %v1520 = vrot.slane %v1519, 2
    %v1521 = vadd.f32 %v1519, %v1520
    %v1522 = vrot.slane %v1521, 1
    %v1523 = vadd.f32 %v1521, %v1522
    %v1524 = vrcp.pop 2.0
    %v1525 = vmul.f32 2.0, %v1524
    %v1526 = vsub.f32 1.0, %v1525
    %v1527 = vmul.f32 %v1524, %v1526
    %v1528 = vadd.f32 %v1524, %v1527
    %vm1529 = vweird.f32 %v1524
    %v1530 = vsel %vm1529, %v1524, %v1528
    %v1531 = vmul.f32 %v1523, %v1530
    %v1532 = vadd.f32 %v1531, 0.0
    %1534 = vrot.lane.b32.xlu0 %v1469, 64
    %v1535 = vpop.permute.xlu0 %1534
    %v1537 = vsel %vm1372, %v1535, 0.0
    %1538 = vadd.xlane.f32.xlu0 %v1537
    %v1539 = vpop.xlane.xlu0 %1538
    %v1540 = vadd.f32 %v1539, 1e-12
    %v1541 = vrsqrt.pop %v1540
    %v1542 = vmul.f32 %v1541, %v1540
    %v1543 = vmul.f32 %v1542, %v1541
    %v1544 = vmul.f32 0.5, %v1543
    %v1545 = vsub.f32 1.5, %v1544
    %v1546 = vmul.f32 %v1541, %v1545
    %vm1547 = vweird.f32 %v1540
    %vm1548 = vweird.f32 %v1541
    %vm1549 = vmor %vm1547, %vm1548
    %v1550 = vsel %vm1549, %v1541, %v1546
    %v1551 = vmul.f32 %v1467, %v1550
    %v1553 = vrot.slane %v1551, 6
    %v1555 = vsub.f32 %v1551, %v1553
    %v1556 = vmul.f32 %v1555, %v1555
    %1558 = vrot.lane.b32.xlu0 %v1556, 64
    %v1559 = vpop.permute.xlu0 %1558
    %v1561 = vsel %vm1490, %v1559, 0.0
    %1562 = vadd.xlane.f32.xlu0 %v1561
    %v1563 = vpop.xlane.xlu0 %1562
    %v1564 = vadd.f32 %v1563, 1e-12
    %v1565 = vrsqrt.pop %v1564
    %v1566 = vmul.f32 %v1565, %v1564
    %v1567 = vmul.f32 %v1566, %v1565
    %v1568 = vmul.f32 0.5, %v1567
    %v1569 = vsub.f32 1.5, %v1568
    %v1570 = vmul.f32 %v1565, %v1569
    %vm1571 = vweird.f32 %v1564
    %vm1572 = vweird.f32 %v1565
    %vm1573 = vmor %vm1571, %vm1572
    %v1574 = vsel %vm1573, %v1565, %v1570
    %v1575 = vmul.f32 %v1555, %v1574
    %v1576 = vmul.f32 %v1575, %v1507
    %1578 = vrot.lane.b32.xlu0 %v1576, 64
    %v1579 = vpop.permute.xlu0 %1578
    %v1581 = vsel %vm1490, %v1579, 0.0
    %1582 = vadd.xlane.f32.xlu0 %v1581
    %v1583 = vpop.xlane.xlu0 %1582
    %v1584 = vsub.f32 1.0, %v1583
    %v1586 = vrot.slane %v1584, 2
    %v1588 = vsel %vm1356, %v1586, 0.0
    %v1589 = vrot.slane %v1588, 4
    %v1590 = vadd.f32 %v1588, %v1589
    %v1591 = vrot.slane %v1590, 2
    %v1592 = vadd.f32 %v1590, %v1591
    %v1593 = vrot.slane %v1592, 1
    %v1594 = vadd.f32 %v1592, %v1593
    %v1595 = vmul.f32 %v1594, %v1530
    %v1596 = vmul.f32 %v1595, 0.5
    %v1597 = vadd.f32 %v1532, %v1596
    %1598 = vst [vmem:[#allocation7] sm:$0x1] %v1597
    // Predicated region
    $region70: #{_lambda_.1} parent=1 // pred_check
      _
    $region71: #{_lambda_.1} parent=1 // pred_check_branch
      %1600 = sbr.rel (0) target = $region73
    $region72: #{_lambda_.1} parent=1 // pred_region
      _
    $region73: #{_lambda_.1} parent=1 // pred_fallthru
      _
    // Predicated region
    $region74: #{_lambda_.1} parent=1 // pred_check
      _
    $region75: #{_lambda_.1} parent=1 // pred_check_branch
      %1602 = sbr.rel (0) target = $region77
    $region76: #{_lambda_.1} parent=1 // pred_region
      %1604 = vsyncadd [#allocation4], 0
      %s1606 = sshll.u32 [#allocation7], 4
      %s1607 = int_to_ptr.vmem [resolvable:$true] %s1606
      %s1608 = sshll.u32 %s16, 4
      %s1609 = int_to_ptr.hbm [resolvable:$true] %s1608
      %1611 = dma.vmem_to_hbm [thread:$0]  %s1607, 16, %s1609, [#allocation4]
    $region77: #{_lambda_.1} parent=1 // pred_fallthru
      _
    // Predicated region
    $region78: #{_lambda_.1} parent=1 // pred_check
      _
    $region79: #{_lambda_.1} parent=1 // pred_check_branch
      %1613 = sbr.rel (0) target = $region81
    $region80: #{_lambda_.1} parent=1 // pred_region
      _
    $region81: #{_lambda_.1} parent=1 // pred_fallthru
      _
    // Predicated region
    $region82: #{_lambda_.1} parent=1 // pred_check
      _
    $region83: #{_lambda_.1} parent=1 // pred_check_branch
      %1615 = sbr.rel (0) target = $region85
    $region84: #{_lambda_.1} parent=1 // pred_region
      %1617 = dma.done [#allocation4], 16
    $region85: #{_lambda_.1} parent=1 // pred_fallthru
      _
    %1618 = vsyncpa [#allocation3], 1
    %1619 = vsyncpa [#allocation6], 1
    %1620 = vsyncpa [#allocation4], 1

</llo_original>
